<compile_context>
chip_gen: v6e
topology: v6e:2x2x1
jax: 0.10.0
libtpu: 0.0.40
codegen_flags: <defaults>
</compile_context>

<pallas_src>
import math
from functools import partial

import jax
import jax.numpy as jnp
from jax.experimental import pallas as pl
from jax.experimental.pallas import tpu as pltpu

_LANE = 128


def _round_up(v, m):
    return -(-v // m) * m


def _nbeats_kernel(num_layers, *refs):
    """refs = (x, w0, b0, ..., w_{L-1}, b_{L-1}, w_out, b_out, out).

    Weights are pre-transposed to (in, out) and zero-padded to lane-aligned
    widths; the theta layer and both Fourier bases are pre-folded into the
    single (hidden_pad, out_pad) projection `w_out`, so the whole block is
    num_layers+1 MXU matmuls ending in one lane-dense store."""
    x_ref = refs[0]
    out_ref = refs[-1]
    w_refs = refs[1:-1]

    h = x_ref[...]                                          # (tile_b, input_size) f32
    idx = 0
    for _ in range(num_layers):                             # FC stack: Linear + ReLU
        w = w_refs[idx][...]                                # (in_pad, hidden_pad)
        b = w_refs[idx + 1][...]                            # (1, hidden_pad) f32
        idx += 2
        h = jnp.maximum(
            jnp.dot(h.astype(w.dtype), w,
                    preferred_element_type=jnp.float32) + b, 0.0)

    w_out = w_refs[idx][...]                                # (hidden_pad, out_pad)
    b_out = w_refs[idx + 1][...]                            # (1, out_pad)
    out_ref[...] = (jnp.dot(h.astype(w_out.dtype), w_out,
                            preferred_element_type=jnp.float32)
                    + b_out).astype(out_ref.dtype)


def make_fourier_basis(length, num_harmonics):
    """Replicates torch _init_basis exactly: integer time t = 0..length-1, rows
    [sin(2*pi*1*t), cos(2*pi*1*t), sin(2*pi*2*t), cos(2*pi*2*t), ...] stacked
    and transposed -> (length, 2*num_harmonics) == the registered buffer."""
    t = jnp.arange(length, dtype=jnp.float32)
    rows = []
    for i in range(1, num_harmonics + 1):
        ang = (2.0 * math.pi * float(i)) * t
        rows.append(jnp.sin(ang))
        rows.append(jnp.cos(ang))
    return jnp.stack(rows, axis=0).T                        # (length, 2H)


def nbeats_seasonality_block(x, fc_weights, fc_biases, theta_weight, theta_bias,
                             backcast_basis, forecast_basis, output_size):
    """Fused forward pass. Torch layouts:
         x:              (B, input_size)
         fc_weights[l]:  (out_l, in_l)     fc_biases[l]: (out_l,)
         theta_weight:   (2H, hidden)      theta_bias:   (2H,)
         backcast_basis: (input_size, 2H)  forecast_basis: (n_ahead, 2H)
       Returns (backcast (B, input_size), forecast (B, n_ahead, output_size))."""
    B, input_size = x.shape
    num_layers = len(fc_weights)
    hidden_size = fc_weights[-1].shape[0]
    n_ahead = forecast_basis.shape[0]
    hp = jax.lax.Precision.HIGHEST

    # ---- fold theta layer + Fourier bases into ONE output projection -------
    #   [backcast | forecast] = theta @ [basis_back.T | basis_fore.T]
    #                         = h @ (Wt.T @ basis_cat) + bt @ basis_cat
    # (K = 2H is far too small for the MXU; fold it once on the host.)
    basis_cat = jnp.concatenate([backcast_basis.T, forecast_basis.T], axis=1)  # (2H, in+ahead)
    w_out = jnp.dot(theta_weight.T, basis_cat, precision=hp)                   # (hidden, in+ahead)
    b_out = jnp.dot(theta_bias, basis_cat, precision=hp)                       # (in+ahead,)

    # ---- lane-align feature dims with zero padding (math-preserving) -------
    hidden_pad = _round_up(hidden_size, _LANE)
    out_width = input_size + n_ahead
    out_pad = _round_up(out_width, _LANE)

    # bf16 inputs / f32 accumulation only pays off when the FC stack is
    # compute-bound (production widths); stays f32 at small hidden sizes.
    compute_dtype = jnp.bfloat16 if hidden_size >= 256 else jnp.float32

    weight_args = []
    in_dim = input_size
    for w, b in zip(fc_weights, fc_biases):
        wt = jnp.asarray(w, jnp.float32).T                  # (in, out)
        wt = jnp.pad(wt, ((0, in_dim - wt.shape[0]),
                          (0, hidden_pad - wt.shape[1])))
        bt = jnp.pad(jnp.asarray(b, jnp.float32), (0, hidden_pad - b.shape[0]))
        weight_args += [wt.astype(compute_dtype), bt.reshape(1, -1)]
        in_dim = hidden_pad
    w_out = jnp.pad(w_out, ((0, hidden_pad - w_out.shape[0]),
                            (0, out_pad - w_out.shape[1])))
    b_out = jnp.pad(b_out, (0, out_pad - b_out.shape[0]))
    weight_args += [w_out.astype(jnp.float32), b_out.reshape(1, -1)]

    # ---- batch tiling: >=2 grid steps when possible (v7x: 2 TCs), cap 1024 --
    if B <= 8:
        tile_b = B
    else:
        tile_b = min(1024, _round_up(-(-B // 2), 8), _round_up(B, 8))
    grid = (-(-B // tile_b),)

    # ---- explicit VMEM budget ----------------------------------------------
    weight_bytes = sum(int(a.size) * a.dtype.itemsize for a in weight_args)
    act_bytes = 4 * tile_b * max(input_size, hidden_pad, out_pad)
    vmem_bytes = (2 * 4 * tile_b * input_size      # x tile, double-buffered
                  + 2 * 4 * tile_b * out_pad       # fused output tile, double-buffered
                  + 2 * weight_bytes               # resident weights (worst case 2x)
                  + 4 * act_bytes)                 # live h tiles / headroom
    vmem_bytes = int(min(max(vmem_bytes, 8 << 20), 64 << 20))

    x_spec = pl.BlockSpec((tile_b, input_size), lambda i: (i, 0))
    out_spec = pl.BlockSpec((tile_b, out_pad), lambda i: (i, 0))
    out_shape = jax.ShapeDtypeStruct((B, out_pad), jnp.float32)

    def resident_spec(shape, single_buffer):
        # Constant block index across the grid -> one VMEM copy is enough.
        if single_buffer and hasattr(pl, "Buffered"):
            try:
                return pl.BlockSpec(shape, lambda i: (0,) * len(shape),
                                    pipeline_mode=pl.Buffered(1))
            except Exception:
                pass
        return pl.BlockSpec(shape, lambda i: (0,) * len(shape))

    def run(single_buffer):
        in_specs = [x_spec] + [resident_spec(a.shape, single_buffer)
                               for a in weight_args]
        return pl.pallas_call(
            partial(_nbeats_kernel, num_layers),
            out_shape=out_shape,
            grid=grid,
            in_specs=in_specs,
            out_specs=out_spec,
            compiler_params=pltpu.CompilerParams(
                dimension_semantics=("parallel",),
                vmem_limit_bytes=vmem_bytes),
        )(x, *weight_args)

    try:
        fused = run(single_buffer=True)
    except Exception:
        # pipeline_mode=pl.Buffered(1) unsupported on this jax version; fall
        # back to default double-buffered resident weights (same results).
        fused = run(single_buffer=False)

    backcast = fused[:, :input_size]
    forecast = fused[:, input_size:out_width]
    # torch: forecast.unsqueeze(-1).expand(-1, -1, output_size) — pure broadcast.
    forecast = jnp.broadcast_to(forecast[:, :, None], (B, n_ahead, output_size))
    return backcast, forecast


# ------------------------------ reference & test ------------------------------

def _reference_forward(x, fc_ws, fc_bs, theta_w, theta_b,
                       backcast_basis, forecast_basis, output_size):
    """Direct (unfused) transcription of NBeatsSeasonalityBlock.forward."""
    hp = jax.lax.Precision.HIGHEST
    h = x
    for w, b in zip(fc_ws, fc_bs):
        h = jnp.maximum(jnp.dot(h, w.T, precision=hp) + b, 0.0)
    theta = jnp.dot(h, theta_w.T, precision=hp) + theta_b
    back = jnp.dot(theta, backcast_basis.T, precision=hp)   # matmul(basis, theta[...,None]).squeeze
    fore = jnp.dot(theta, forecast_basis.T, precision=hp)
    fore = jnp.broadcast_to(fore[:, :, None], fore.shape + (output_size,))
    return back, fore


def _init_linear(key, fan_in, fan_out):
    # nn.Linear default init, torch layout (out, in).
    kw, kb = jax.random.split(key)
    bound = 1.0 / math.sqrt(fan_in)
    w = jax.random.uniform(kw, (fan_out, fan_in), jnp.float32, -bound, bound)
    b = jax.random.uniform(kb, (fan_out,), jnp.float32, -bound, bound)
    return w, b


if __name__ == "__main__":
    key = jax.random.PRNGKey(0)
    batch, input_size, hidden_size = 16, 16, 32
    num_layers, num_harmonics = 3, 4
    output_size, n_ahead = 4, 1

    keys = jax.random.split(key, num_layers + 2)
    x = jax.random.normal(keys[0], (batch, input_size), dtype=jnp.float32)

    fc_ws, fc_bs = [], []
    cur = input_size
    for l in range(num_layers):
        w, b = _init_linear(keys[1 + l], cur, hidden_size)
        fc_ws.append(w)
        fc_bs.append(b)
        cur = hidden_size
    theta_w, theta_b = _init_linear(keys[-1], hidden_size, 2 * num_harmonics)

    # Registered buffers, replicated exactly as in torch _init_basis.
    backcast_basis = make_fourier_basis(input_size, num_harmonics)   # (input_size, 2H)
    forecast_basis = make_fourier_basis(n_ahead, num_harmonics)      # (n_ahead, 2H)

    backcast, forecast = nbeats_seasonality_block(
        x, fc_ws, fc_bs, theta_w, theta_b,
        backcast_basis, forecast_basis, output_size)
    backcast, forecast = jax.block_until_ready((backcast, forecast))

    ref_back, ref_fore = _reference_forward(
        x, fc_ws, fc_bs, theta_w, theta_b,
        backcast_basis, forecast_basis, output_size)

    assert backcast.shape == (batch, input_size), backcast.shape
    assert forecast.shape == (batch, n_ahead, output_size), forecast.shape
    assert jnp.allclose(backcast, ref_back, atol=1e-3, rtol=1e-3), (
        "backcast mismatch, max err %e"
        % float(jnp.max(jnp.abs(backcast - ref_back))))
    assert jnp.allclose(forecast, ref_fore, atol=1e-3, rtol=1e-3), (
        "forecast mismatch, max err %e"
        % float(jnp.max(jnp.abs(forecast - ref_fore))))

    print("KERNEL_OK")
</pallas_src>

<mosaic_0001>
module attributes {stable_mosaic.version = 11 : i64} {
  func.func @_nbeats_kernel(%arg0: i32, %arg1: memref<8x16xf32, #tpu.memory_space<vmem>>, %arg2: memref<16x128xf32, #tpu.memory_space<vmem>>, %arg3: memref<1x128xf32, #tpu.memory_space<vmem>>, %arg4: memref<128x128xf32, #tpu.memory_space<vmem>>, %arg5: memref<1x128xf32, #tpu.memory_space<vmem>>, %arg6: memref<128x128xf32, #tpu.memory_space<vmem>>, %arg7: memref<1x128xf32, #tpu.memory_space<vmem>>, %arg8: memref<128x128xf32, #tpu.memory_space<vmem>>, %arg9: memref<1x128xf32, #tpu.memory_space<vmem>>, %arg10: memref<8x128xf32, #tpu.memory_space<vmem>>) attributes {dimension_semantics = [#tpu.dimension_semantics<parallel>], iteration_bounds = array<i64: 2>, scalar_prefetch = 0 : i64, scratch_operands = 0 : i64, tpu.core_type = #tpu.core_type<tc>, window_params = [{transform_indices = @transform_0, window_bounds = array<i64: 8, 16>}, {pipeline_mode = #tpu.pipeline_mode<synchronous>, transform_indices = @transform_1, window_bounds = array<i64: 16, 128>}, {pipeline_mode = #tpu.pipeline_mode<synchronous>, transform_indices = @transform_2, window_bounds = array<i64: 1, 128>}, {pipeline_mode = #tpu.pipeline_mode<synchronous>, transform_indices = @transform_3, window_bounds = array<i64: 128, 128>}, {pipeline_mode = #tpu.pipeline_mode<synchronous>, transform_indices = @transform_4, window_bounds = array<i64: 1, 128>}, {pipeline_mode = #tpu.pipeline_mode<synchronous>, transform_indices = @transform_5, window_bounds = array<i64: 128, 128>}, {pipeline_mode = #tpu.pipeline_mode<synchronous>, transform_indices = @transform_6, window_bounds = array<i64: 1, 128>}, {pipeline_mode = #tpu.pipeline_mode<synchronous>, transform_indices = @transform_7, window_bounds = array<i64: 128, 128>}, {pipeline_mode = #tpu.pipeline_mode<synchronous>, transform_indices = @transform_8, window_bounds = array<i64: 1, 128>}, {transform_indices = @transform_9, window_bounds = array<i64: 8, 128>}]} {
    %c0 = arith.constant 0 : index
    %c0_0 = arith.constant 0 : index
    %0 = vector.load %arg1[%c0, %c0_0] : memref<8x16xf32, #tpu.memory_space<vmem>>, vector<8x16xf32>
    %c0_1 = arith.constant 0 : index
    %c0_2 = arith.constant 0 : index
    %1 = vector.load %arg2[%c0_1, %c0_2] : memref<16x128xf32, #tpu.memory_space<vmem>>, vector<16x128xf32>
    %c0_3 = arith.constant 0 : index
    %c0_4 = arith.constant 0 : index
    %2 = vector.load %arg3[%c0_3, %c0_4] : memref<1x128xf32, #tpu.memory_space<vmem>>, vector<1x128xf32>
    %cst = arith.constant dense<0.000000e+00> : vector<8x128xf32>
    %3 = tpu.matmul %0, %1, %cst {dimension_numbers = #tpu.dot_dimension_numbers<[1], [0], [0], [1], [0, 0, 1, 1], [], []>} : vector<8x16xf32>, vector<16x128xf32>, vector<8x128xf32> -> vector<8x128xf32>
    %4 = vector.broadcast %2 : vector<1x128xf32> to vector<8x128xf32>
    %5 = arith.addf %3, %4 : vector<8x128xf32>
    %cst_5 = arith.constant 0.000000e+00 : f32
    %6 = vector.broadcast %cst_5 : f32 to vector<8x128xf32>
    %7 = arith.maximumf %5, %6 : vector<8x128xf32>
    %c0_6 = arith.constant 0 : index
    %c0_7 = arith.constant 0 : index
    %8 = vector.load %arg4[%c0_6, %c0_7] : memref<128x128xf32, #tpu.memory_space<vmem>>, vector<128x128xf32>
    %c0_8 = arith.constant 0 : index
    %c0_9 = arith.constant 0 : index
    %9 = vector.load %arg5[%c0_8, %c0_9] : memref<1x128xf32, #tpu.memory_space<vmem>>, vector<1x128xf32>
    %cst_10 = arith.constant dense<0.000000e+00> : vector<8x128xf32>
    %10 = tpu.matmul %7, %8, %cst_10 {dimension_numbers = #tpu.dot_dimension_numbers<[1], [0], [0], [1], [0, 0, 1, 1], [], []>} : vector<8x128xf32>, vector<128x128xf32>, vector<8x128xf32> -> vector<8x128xf32>
    %11 = vector.broadcast %9 : vector<1x128xf32> to vector<8x128xf32>
    %12 = arith.addf %10, %11 : vector<8x128xf32>
    %cst_11 = arith.constant 0.000000e+00 : f32
    %13 = vector.broadcast %cst_11 : f32 to vector<8x128xf32>
    %14 = arith.maximumf %12, %13 : vector<8x128xf32>
    %c0_12 = arith.constant 0 : index
    %c0_13 = arith.constant 0 : index
    %15 = vector.load %arg6[%c0_12, %c0_13] : memref<128x128xf32, #tpu.memory_space<vmem>>, vector<128x128xf32>
    %c0_14 = arith.constant 0 : index
    %c0_15 = arith.constant 0 : index
    %16 = vector.load %arg7[%c0_14, %c0_15] : memref<1x128xf32, #tpu.memory_space<vmem>>, vector<1x128xf32>
    %cst_16 = arith.constant dense<0.000000e+00> : vector<8x128xf32>
    %17 = tpu.matmul %14, %15, %cst_16 {dimension_numbers = #tpu.dot_dimension_numbers<[1], [0], [0], [1], [0, 0, 1, 1], [], []>} : vector<8x128xf32>, vector<128x128xf32>, vector<8x128xf32> -> vector<8x128xf32>
    %18 = vector.broadcast %16 : vector<1x128xf32> to vector<8x128xf32>
    %19 = arith.addf %17, %18 : vector<8x128xf32>
    %cst_17 = arith.constant 0.000000e+00 : f32
    %20 = vector.broadcast %cst_17 : f32 to vector<8x128xf32>
    %21 = arith.maximumf %19, %20 : vector<8x128xf32>
    %c0_18 = arith.constant 0 : index
    %c0_19 = arith.constant 0 : index
    %22 = vector.load %arg8[%c0_18, %c0_19] : memref<128x128xf32, #tpu.memory_space<vmem>>, vector<128x128xf32>
    %c0_20 = arith.constant 0 : index
    %c0_21 = arith.constant 0 : index
    %23 = vector.load %arg9[%c0_20, %c0_21] : memref<1x128xf32, #tpu.memory_space<vmem>>, vector<1x128xf32>
    %cst_22 = arith.constant dense<0.000000e+00> : vector<8x128xf32>
    %24 = tpu.matmul %21, %22, %cst_22 {dimension_numbers = #tpu.dot_dimension_numbers<[1], [0], [0], [1], [0, 0, 1, 1], [], []>} : vector<8x128xf32>, vector<128x128xf32>, vector<8x128xf32> -> vector<8x128xf32>
    %25 = vector.broadcast %23 : vector<1x128xf32> to vector<8x128xf32>
    %26 = arith.addf %24, %25 : vector<8x128xf32>
    %c0_23 = arith.constant 0 : index
    %c0_24 = arith.constant 0 : index
    %27 = vector.load %arg10[%c0_23, %c0_24] : memref<8x128xf32, #tpu.memory_space<vmem>>, vector<8x128xf32>
    tpu.vector_store %arg10[%c0_23, %c0_24], %26 {strides = array<i32>} : memref<8x128xf32, #tpu.memory_space<vmem>>, vector<8x128xf32>,
    return
  }
  func.func @transform_0(%arg0: i32) -> (i32, i32) {
    %c0_i32 = arith.constant 0 : i32
    %c0_i32_0 = arith.constant 0 : i32
    return %arg0, %c0_i32 : i32, i32
  }
  func.func @transform_1(%arg0: i32) -> (i32, i32) {
    %c0_i32 = arith.constant 0 : i32
    %c0_i32_0 = arith.constant 0 : i32
    %c0_i32_1 = arith.constant 0 : i32
    return %c0_i32, %c0_i32_0 : i32, i32
  }
  func.func @transform_2(%arg0: i32) -> (i32, i32) {
    %c0_i32 = arith.constant 0 : i32
    %c0_i32_0 = arith.constant 0 : i32
    %c0_i32_1 = arith.constant 0 : i32
    return %c0_i32, %c0_i32_0 : i32, i32
  }
  func.func @transform_3(%arg0: i32) -> (i32, i32) {
    %c0_i32 = arith.constant 0 : i32
    %c0_i32_0 = arith.constant 0 : i32
    %c0_i32_1 = arith.constant 0 : i32
    return %c0_i32, %c0_i32_0 : i32, i32
  }
  func.func @transform_4(%arg0: i32) -> (i32, i32) {
    %c0_i32 = arith.constant 0 : i32
    %c0_i32_0 = arith.constant 0 : i32
    %c0_i32_1 = arith.constant 0 : i32
    return %c0_i32, %c0_i32_0 : i32, i32
  }
  func.func @transform_5(%arg0: i32) -> (i32, i32) {
    %c0_i32 = arith.constant 0 : i32
    %c0_i32_0 = arith.constant 0 : i32
    %c0_i32_1 = arith.constant 0 : i32
    return %c0_i32, %c0_i32_0 : i32, i32
  }
  func.func @transform_6(%arg0: i32) -> (i32, i32) {
    %c0_i32 = arith.constant 0 : i32
    %c0_i32_0 = arith.constant 0 : i32
    %c0_i32_1 = arith.constant 0 : i32
    return %c0_i32, %c0_i32_0 : i32, i32
  }
  func.func @transform_7(%arg0: i32) -> (i32, i32) {
    %c0_i32 = arith.constant 0 : i32
    %c0_i32_0 = arith.constant 0 : i32
    %c0_i32_1 = arith.constant 0 : i32
    return %c0_i32, %c0_i32_0 : i32, i32
  }
  func.func @transform_8(%arg0: i32) -> (i32, i32) {
    %c0_i32 = arith.constant 0 : i32
    %c0_i32_0 = arith.constant 0 : i32
    %c0_i32_1 = arith.constant 0 : i32
    return %c0_i32, %c0_i32_0 : i32, i32
  }
  func.func @transform_9(%arg0: i32) -> (i32, i32) {
    %c0_i32 = arith.constant 0 : i32
    %c0_i32_0 = arith.constant 0 : i32
    return %arg0, %c0_i32 : i32, i32
  }
}

module attributes {stable_mosaic.version = 11 : i64} {
  func.func @_nbeats_kernel(%arg0: i32, %arg1: memref<8x16xf32, #tpu.memory_space<vmem>>, %arg2: memref<16x128xf32, #tpu.memory_space<vmem>>, %arg3: memref<1x128xf32, #tpu.memory_space<vmem>>, %arg4: memref<128x128xf32, #tpu.memory_space<vmem>>, %arg5: memref<1x128xf32, #tpu.memory_space<vmem>>, %arg6: memref<128x128xf32, #tpu.memory_space<vmem>>, %arg7: memref<1x128xf32, #tpu.memory_space<vmem>>, %arg8: memref<128x128xf32, #tpu.memory_space<vmem>>, %arg9: memref<1x128xf32, #tpu.memory_space<vmem>>, %arg10: memref<8x128xf32, #tpu.memory_space<vmem>>) attributes {dimension_semantics = [#tpu.dimension_semantics<parallel>], iteration_bounds = array<i64: 2>, scalar_prefetch = 0 : i64, scratch_operands = 0 : i64, tpu.core_type = #tpu.core_type<tc>, window_params = [{transform_indices = @transform_0, window_bounds = array<i64: 8, 16>}, {pipeline_mode = #tpu.pipeline_mode<synchronous>, transform_indices = @transform_1, window_bounds = array<i64: 16, 128>}, {pipeline_mode = #tpu.pipeline_mode<synchronous>, transform_indices = @transform_2, window_bounds = array<i64: 1, 128>}, {pipeline_mode = #tpu.pipeline_mode<synchronous>, transform_indices = @transform_3, window_bounds = array<i64: 128, 128>}, {pipeline_mode = #tpu.pipeline_mode<synchronous>, transform_indices = @transform_4, window_bounds = array<i64: 1, 128>}, {pipeline_mode = #tpu.pipeline_mode<synchronous>, transform_indices = @transform_5, window_bounds = array<i64: 128, 128>}, {pipeline_mode = #tpu.pipeline_mode<synchronous>, transform_indices = @transform_6, window_bounds = array<i64: 1, 128>}, {pipeline_mode = #tpu.pipeline_mode<synchronous>, transform_indices = @transform_7, window_bounds = array<i64: 128, 128>}, {pipeline_mode = #tpu.pipeline_mode<synchronous>, transform_indices = @transform_8, window_bounds = array<i64: 1, 128>}, {transform_indices = @transform_9, window_bounds = array<i64: 8, 128>}]} {
    %c0 = arith.constant 0 : index
    %c0_0 = arith.constant 0 : index
    %0 = vector.load %arg1[%c0, %c0_0] : memref<8x16xf32, #tpu.memory_space<vmem>>, vector<8x16xf32>
    %c0_1 = arith.constant 0 : index
    %c0_2 = arith.constant 0 : index
    %1 = vector.load %arg2[%c0_1, %c0_2] : memref<16x128xf32, #tpu.memory_space<vmem>>, vector<16x128xf32>
    %c0_3 = arith.constant 0 : index
    %c0_4 = arith.constant 0 : index
    %2 = vector.load %arg3[%c0_3, %c0_4] : memref<1x128xf32, #tpu.memory_space<vmem>>, vector<1x128xf32>
    %cst = arith.constant dense<0.000000e+00> : vector<8x128xf32>
    %3 = tpu.matmul %0, %1, %cst {dimension_numbers = #tpu.dot_dimension_numbers<[1], [0], [0], [1], [0, 0, 1, 1], [], []>} : vector<8x16xf32>, vector<16x128xf32>, vector<8x128xf32> -> vector<8x128xf32>
    %4 = vector.broadcast %2 : vector<1x128xf32> to vector<8x128xf32>
    %5 = arith.addf %3, %4 : vector<8x128xf32>
    %cst_5 = arith.constant 0.000000e+00 : f32
    %6 = vector.broadcast %cst_5 : f32 to vector<8x128xf32>
    %7 = arith.maximumf %5, %6 : vector<8x128xf32>
    %c0_6 = arith.constant 0 : index
    %c0_7 = arith.constant 0 : index
    %8 = vector.load %arg4[%c0_6, %c0_7] : memref<128x128xf32, #tpu.memory_space<vmem>>, vector<128x128xf32>
    %c0_8 = arith.constant 0 : index
    %c0_9 = arith.constant 0 : index
    %9 = vector.load %arg5[%c0_8, %c0_9] : memref<1x128xf32, #tpu.memory_space<vmem>>, vector<1x128xf32>
    %cst_10 = arith.constant dense<0.000000e+00> : vector<8x128xf32>
    %10 = tpu.matmul %7, %8, %cst_10 {dimension_numbers = #tpu.dot_dimension_numbers<[1], [0], [0], [1], [0, 0, 1, 1], [], []>} : vector<8x128xf32>, vector<128x128xf32>, vector<8x128xf32> -> vector<8x128xf32>
    %11 = vector.broadcast %9 : vector<1x128xf32> to vector<8x128xf32>
    %12 = arith.addf %10, %11 : vector<8x128xf32>
    %cst_11 = arith.constant 0.000000e+00 : f32
    %13 = vector.broadcast %cst_11 : f32 to vector<8x128xf32>
    %14 = arith.maximumf %12, %13 : vector<8x128xf32>
    %c0_12 = arith.constant 0 : index
    %c0_13 = arith.constant 0 : index
    %15 = vector.load %arg6[%c0_12, %c0_13] : memref<128x128xf32, #tpu.memory_space<vmem>>, vector<128x128xf32>
    %c0_14 = arith.constant 0 : index
    %c0_15 = arith.constant 0 : index
    %16 = vector.load %arg7[%c0_14, %c0_15] : memref<1x128xf32, #tpu.memory_space<vmem>>, vector<1x128xf32>
    %cst_16 = arith.constant dense<0.000000e+00> : vector<8x128xf32>
    %17 = tpu.matmul %14, %15, %cst_16 {dimension_numbers = #tpu.dot_dimension_numbers<[1], [0], [0], [1], [0, 0, 1, 1], [], []>} : vector<8x128xf32>, vector<128x128xf32>, vector<8x128xf32> -> vector<8x128xf32>
    %18 = vector.broadcast %16 : vector<1x128xf32> to vector<8x128xf32>
    %19 = arith.addf %17, %18 : vector<8x128xf32>
    %cst_17 = arith.constant 0.000000e+00 : f32
    %20 = vector.broadcast %cst_17 : f32 to vector<8x128xf32>
    %21 = arith.maximumf %19, %20 : vector<8x128xf32>
    %c0_18 = arith.constant 0 : index
    %c0_19 = arith.constant 0 : index
    %22 = vector.load %arg8[%c0_18, %c0_19] : memref<128x128xf32, #tpu.memory_space<vmem>>, vector<128x128xf32>
    %c0_20 = arith.constant 0 : index
    %c0_21 = arith.constant 0 : index
    %23 = vector.load %arg9[%c0_20, %c0_21] : memref<1x128xf32, #tpu.memory_space<vmem>>, vector<1x128xf32>
    %cst_22 = arith.constant dense<0.000000e+00> : vector<8x128xf32>
    %24 = tpu.matmul %21, %22, %cst_22 {dimension_numbers = #tpu.dot_dimension_numbers<[1], [0], [0], [1], [0, 0, 1, 1], [], []>} : vector<8x128xf32>, vector<128x128xf32>, vector<8x128xf32> -> vector<8x128xf32>
    %25 = vector.broadcast %23 : vector<1x128xf32> to vector<8x128xf32>
    %26 = arith.addf %24, %25 : vector<8x128xf32>
    %c0_23 = arith.constant 0 : index
    %c0_24 = arith.constant 0 : index
    %27 = vector.load %arg10[%c0_23, %c0_24] : memref<8x128xf32, #tpu.memory_space<vmem>>, vector<8x128xf32>
    tpu.vector_store %arg10[%c0_23, %c0_24], %26 {strides = array<i32>} : memref<8x128xf32, #tpu.memory_space<vmem>>, vector<8x128xf32>,
    return
  }
  func.func @transform_0(%arg0: i32) -> (i32, i32) {
    %c0_i32 = arith.constant 0 : i32
    %c0_i32_0 = arith.constant 0 : i32
    return %arg0, %c0_i32 : i32, i32
  }
  func.func @transform_1(%arg0: i32) -> (i32, i32) {
    %c0_i32 = arith.constant 0 : i32
    %c0_i32_0 = arith.constant 0 : i32
    %c0_i32_1 = arith.constant 0 : i32
    return %c0_i32, %c0_i32_0 : i32, i32
  }
  func.func @transform_2(%arg0: i32) -> (i32, i32) {
    %c0_i32 = arith.constant 0 : i32
    %c0_i32_0 = arith.constant 0 : i32
    %c0_i32_1 = arith.constant 0 : i32
    return %c0_i32, %c0_i32_0 : i32, i32
  }
  func.func @transform_3(%arg0: i32) -> (i32, i32) {
    %c0_i32 = arith.constant 0 : i32
    %c0_i32_0 = arith.constant 0 : i32
    %c0_i32_1 = arith.constant 0 : i32
    return %c0_i32, %c0_i32_0 : i32, i32
  }
  func.func @transform_4(%arg0: i32) -> (i32, i32) {
    %c0_i32 = arith.constant 0 : i32
    %c0_i32_0 = arith.constant 0 : i32
    %c0_i32_1 = arith.constant 0 : i32
    return %c0_i32, %c0_i32_0 : i32, i32
  }
  func.func @transform_5(%arg0: i32) -> (i32, i32) {
    %c0_i32 = arith.constant 0 : i32
    %c0_i32_0 = arith.constant 0 : i32
    %c0_i32_1 = arith.constant 0 : i32
    return %c0_i32, %c0_i32_0 : i32, i32
  }
  func.func @transform_6(%arg0: i32) -> (i32, i32) {
    %c0_i32 = arith.constant 0 : i32
    %c0_i32_0 = arith.constant 0 : i32
    %c0_i32_1 = arith.constant 0 : i32
    return %c0_i32, %c0_i32_0 : i32, i32
  }
  func.func @transform_7(%arg0: i32) -> (i32, i32) {
    %c0_i32 = arith.constant 0 : i32
    %c0_i32_0 = arith.constant 0 : i32
    %c0_i32_1 = arith.constant 0 : i32
    return %c0_i32, %c0_i32_0 : i32, i32
  }
  func.func @transform_8(%arg0: i32) -> (i32, i32) {
    %c0_i32 = arith.constant 0 : i32
    %c0_i32_0 = arith.constant 0 : i32
    %c0_i32_1 = arith.constant 0 : i32
    return %c0_i32, %c0_i32_0 : i32, i32
  }
  func.func @transform_9(%arg0: i32) -> (i32, i32) {
    %c0_i32 = arith.constant 0 : i32
    %c0_i32_0 = arith.constant 0 : i32
    return %arg0, %c0_i32 : i32, i32
  }
}

</mosaic_0001>

<llo_original>
// kernel: tpu_custom_call.1
$region0: #{tpu_custom_call.1}
  #allocation0 [shape = 'u32[]', space=smem, size = 0x4, offset = 0x4, fixed_abs, tag = 'smem constant byte address 0x4 - core index']
  #allocation1 [shape = 'u32[144,128]{1,0:T(1,128)}', space=vmem, size = 0x12000, scoped, tag = 'internal scratch']
  %s0 = inlined_call_operand.hbm [shape: f32[16,16], index: 0, kind: input, shape index: {}]
  %s1 = inlined_call_operand.hbm [shape: f32[16,128], index: 1, kind: input, shape index: {}]
  %s2 = inlined_call_operand.vmem [shape: f32[1,128], index: 2, kind: input, shape index: {}]
  %s3 = inlined_call_operand.hbm [shape: f32[128,128], index: 3, kind: input, shape index: {}]
  %s4 = inlined_call_operand.vmem [shape: f32[1,128], index: 4, kind: input, shape index: {}]
  %s5 = inlined_call_operand.hbm [shape: f32[128,128], index: 5, kind: input, shape index: {}]
  %s6 = inlined_call_operand.vmem [shape: f32[1,128], index: 6, kind: input, shape index: {}]
  %s7 = inlined_call_operand.hbm [shape: f32[128,128], index: 7, kind: input, shape index: {}]
  %s8 = inlined_call_operand.vmem [shape: f32[1,128], index: 8, kind: input, shape index: {}]
  %s9 = inlined_call_operand.hbm [shape: f32[16,128], index: 9, kind: output, shape index: {}]
  %s10 = sld [smem:[#allocation0]]
  $region89: #{tpu_custom_call.1} parent=0
    _
  %s12 = ssub.s32 1, %s10
  %s13 = scalar_select 0, %s12, %s10
  $region1: #{tpu_custom_call.1} parent=0
    #allocation2 [shape = 'u8[8192]{0}', space=vmem, size = 0x2000, scoped, tag = 'input window, operand 0']
    #allocation3 [shape = 's32[2]{0}', space=sflag, size = 0x8, scoped, tag = 'scoped memory for tpu_custom_call.1']
    #allocation4 [shape = 's32[2]{0}', space=sflag, size = 0x8, scoped, tag = 'scoped memory for tpu_custom_call.1']
    #allocation5 [shape = 'u8[8192]{0}', space=vmem, size = 0x2000, scoped, tag = 'input window, operand 1, single buffered']
    #allocation6 [shape = 's32[1]{0}', space=sflag, size = 0x4, scoped, tag = 'scoped memory for tpu_custom_call.1']
    #allocation7 [shape = 'u8[65536]{0}', space=vmem, size = 0x10000, scoped, tag = 'input window, operand 3, single buffered']
    #allocation8 [shape = 'u8[65536]{0}', space=vmem, size = 0x10000, scoped, tag = 'input window, operand 5, single buffered']
    #allocation9 [shape = 's32[1]{0}', space=sflag, size = 0x4, scoped, tag = 'scoped memory for tpu_custom_call.1']
    #allocation10 [shape = 'u8[65536]{0}', space=vmem, size = 0x10000, scoped, tag = 'input window, operand 7, single buffered']
    #allocation11 [shape = 'u8[8192]{0}', space=vmem, size = 0x2000, scoped, tag = 'output window, operand 0']
    %14 = vsyncpa [#allocation3], 0
    %s15 = scalar_lea.sflag [#allocation3], 1
    %16 = vsyncpa %s15, 0
    %17 = vsyncpa [#allocation6], 0
    %18 = vsyncpa [#allocation9], 0
    %19 = vsyncpa [#allocation4], 0
    %s20 = scalar_lea.sflag [#allocation4], 1
    %21 = vsyncpa %s20, 0
    loop: start=0, step=1, limit=4
    $region2: #{tpu_custom_call.1} parent=1 // loop_pre_header
      _
    $region3: #{tpu_custom_call.1} parent=1 // loop_header
      %s23 = sphi 0, %s27
      %p24 = scmp.ge.s32.totalorder %s23, 4
      %s33 = sphi 0, %s35
      %s36 = sphi 0, %s33
      %s37 = sphi 0, %s36
      %s53 = sphi 0, %s37
      %s57 = sphi 0, %s57
      %s59 = sphi 0, %s57
      %s60 = sphi 0, %s59
      %s74 = sphi 0, %s60
      %s78 = sphi 0, %s78
      %s80 = sphi 0, %s78
      %s81 = sphi 0, %s80
      %s95 = sphi 0, %s81
      %s99 = sphi 0, %s99
      %s101 = sphi 0, %s99
      %s102 = sphi 0, %s101
      %s116 = sphi 0, %s102
      %s120 = sphi 0, %s120
      %s122 = sphi 0, %s120
      %s123 = sphi 0, %s122
      %s137 = sphi 0, %s123
      %s141 = sphi 0, %s141
      %s143 = sphi 0, %s141
      %s144 = sphi 0, %s143
      %s158 = sphi 0, %s144
      %s162 = sphi 0, %s162
      %s164 = sphi 0, %s162
      %s165 = sphi 0, %s164
      %s179 = sphi 0, %s165
      %s183 = sphi 0, %s183
      %s185 = sphi 0, %s183
      %s186 = sphi 0, %s185
      %s200 = sphi 0, %s186
      %s204 = sphi 0, %s204
      %s206 = sphi 0, %s204
      %s207 = sphi 0, %s206
      %s221 = sphi 0, %s207
      %s227 = sphi 0, %s229
      %s230 = sphi 0, %s227
      %s231 = sphi 0, %s230
      %s247 = sphi 0, %s231
    $region4: #{tpu_custom_call.1} parent=1 // loop_header_branch
      %26 = sbr.rel (%p24) target = $region8
    $region5: #{tpu_custom_call.1} parent=1 // loop_body
      %s28 = ssub.s32 %s23, 1
      %s29 = ssub.s32 %s23, 2
      %s30 = sadd.s32 %s23, 1
      %s31 = ssub.s32 %s23, %s30
      %p32 = scmp.eq.s32.totalorder %s31, 0
      %s34 = sadd.s32 %s33, 1
      %s35 = scalar_select %p32, %s33, %s34
      %p38 = pneg %p32
      %p39 = scmp.eq.s32.totalorder %s23, 1
      %p40 = por %p38, %p39
      %p41 = scmp.ne.s32.totalorder %s33, %s36
      %p42 = scmp.eq.s32.totalorder %s23, 0
      %p43 = por %p41, %p42
      %p44 = scmp.ne.s32.totalorder %s33, %s36
      %p45 = scmp.eq.s32.totalorder %s28, 1
      %p46 = por %p44, %p45
      %p47 = scmp.ne.s32.totalorder %s36, %s37
      %p48 = scmp.eq.s32.totalorder %s28, 0
      %p49 = por %p47, %p48
      %p50 = scmp.ne.s32.totalorder %s36, %s37
      %p51 = scmp.eq.s32.totalorder %s29, 1
      %p52 = por %p50, %p51
      %p54 = scmp.ne.s32.totalorder %s37, %s53
      %p55 = scmp.eq.s32.totalorder %s29, 0
      %p56 = por %p54, %p55
      %s58 = sadd.s32 %s57, 1
      %p61 = scmp.eq.s32.totalorder %s23, 1
      %p62 = scmp.ne.s32.totalorder %s57, %s59
      %p63 = scmp.eq.s32.totalorder %s23, 0
      %p64 = por %p62, %p63
      %p65 = scmp.ne.s32.totalorder %s57, %s59
      %p66 = scmp.eq.s32.totalorder %s28, 1
      %p67 = por %p65, %p66
      %p68 = scmp.ne.s32.totalorder %s59, %s60
      %p69 = scmp.eq.s32.totalorder %s28, 0
      %p70 = por %p68, %p69
      %p71 = scmp.ne.s32.totalorder %s59, %s60
      %p72 = scmp.eq.s32.totalorder %s29, 1
      %p73 = por %p71, %p72
      %p75 = scmp.ne.s32.totalorder %s60, %s74
      %p76 = scmp.eq.s32.totalorder %s29, 0
      %p77 = por %p75, %p76
      %s79 = sadd.s32 %s78, 1
      %p82 = scmp.eq.s32.totalorder %s23, 1
      %p83 = scmp.ne.s32.totalorder %s78, %s80
      %p84 = scmp.eq.s32.totalorder %s23, 0
      %p85 = por %p83, %p84
      %p86 = scmp.ne.s32.totalorder %s78, %s80
      %p87 = scmp.eq.s32.totalorder %s28, 1
      %p88 = por %p86, %p87
      %p89 = scmp.ne.s32.totalorder %s80, %s81
      %p90 = scmp.eq.s32.totalorder %s28, 0
      %p91 = por %p89, %p90
      %p92 = scmp.ne.s32.totalorder %s80, %s81
      %p93 = scmp.eq.s32.totalorder %s29, 1
      %p94 = por %p92, %p93
      %p96 = scmp.ne.s32.totalorder %s81, %s95
      %p97 = scmp.eq.s32.totalorder %s29, 0
      %p98 = por %p96, %p97
      %s100 = sadd.s32 %s99, 1
      %p103 = scmp.eq.s32.totalorder %s23, 1
      %p104 = scmp.ne.s32.totalorder %s99, %s101
      %p105 = scmp.eq.s32.totalorder %s23, 0
      %p106 = por %p104, %p105
      %p107 = scmp.ne.s32.totalorder %s99, %s101
      %p108 = scmp.eq.s32.totalorder %s28, 1
      %p109 = por %p107, %p108
      %p110 = scmp.ne.s32.totalorder %s101, %s102
      %p111 = scmp.eq.s32.totalorder %s28, 0
      %p112 = por %p110, %p111
      %p113 = scmp.ne.s32.totalorder %s101, %s102
      %p114 = scmp.eq.s32.totalorder %s29, 1
      %p115 = por %p113, %p114
      %p117 = scmp.ne.s32.totalorder %s102, %s116
      %p118 = scmp.eq.s32.totalorder %s29, 0
      %p119 = por %p117, %p118
      %s121 = sadd.s32 %s120, 1
      %p124 = scmp.eq.s32.totalorder %s23, 1
      %p125 = scmp.ne.s32.totalorder %s120, %s122
      %p126 = scmp.eq.s32.totalorder %s23, 0
      %p127 = por %p125, %p126
      %p128 = scmp.ne.s32.totalorder %s120, %s122
      %p129 = scmp.eq.s32.totalorder %s28, 1
      %p130 = por %p128, %p129
      %p131 = scmp.ne.s32.totalorder %s122, %s123
      %p132 = scmp.eq.s32.totalorder %s28, 0
      %p133 = por %p131, %p132
      %p134 = scmp.ne.s32.totalorder %s122, %s123
      %p135 = scmp.eq.s32.totalorder %s29, 1
      %p136 = por %p134, %p135
      %p138 = scmp.ne.s32.totalorder %s123, %s137
      %p139 = scmp.eq.s32.totalorder %s29, 0
      %p140 = por %p138, %p139
      %s142 = sadd.s32 %s141, 1
      %p145 = scmp.eq.s32.totalorder %s23, 1
      %p146 = scmp.ne.s32.totalorder %s141, %s143
      %p147 = scmp.eq.s32.totalorder %s23, 0
      %p148 = por %p146, %p147
      %p149 = scmp.ne.s32.totalorder %s141, %s143
      %p150 = scmp.eq.s32.totalorder %s28, 1
      %p151 = por %p149, %p150
      %p152 = scmp.ne.s32.totalorder %s143, %s144
      %p153 = scmp.eq.s32.totalorder %s28, 0
      %p154 = por %p152, %p153
      %p155 = scmp.ne.s32.totalorder %s143, %s144
      %p156 = scmp.eq.s32.totalorder %s29, 1
      %p157 = por %p155, %p156
      %p159 = scmp.ne.s32.totalorder %s144, %s158
      %p160 = scmp.eq.s32.totalorder %s29, 0
      %p161 = por %p159, %p160
      %s163 = sadd.s32 %s162, 1
      %p166 = scmp.eq.s32.totalorder %s23, 1
      %p167 = scmp.ne.s32.totalorder %s162, %s164
      %p168 = scmp.eq.s32.totalorder %s23, 0
      %p169 = por %p167, %p168
      %p170 = scmp.ne.s32.totalorder %s162, %s164
      %p171 = scmp.eq.s32.totalorder %s28, 1
      %p172 = por %p170, %p171
      %p173 = scmp.ne.s32.totalorder %s164, %s165
      %p174 = scmp.eq.s32.totalorder %s28, 0
      %p175 = por %p173, %p174
      %p176 = scmp.ne.s32.totalorder %s164, %s165
      %p177 = scmp.eq.s32.totalorder %s29, 1
      %p178 = por %p176, %p177
      %p180 = scmp.ne.s32.totalorder %s165, %s179
      %p181 = scmp.eq.s32.totalorder %s29, 0
      %p182 = por %p180, %p181
      %s184 = sadd.s32 %s183, 1
      %p187 = scmp.eq.s32.totalorder %s23, 1
      %p188 = scmp.ne.s32.totalorder %s183, %s185
      %p189 = scmp.eq.s32.totalorder %s23, 0
      %p190 = por %p188, %p189
      %p191 = scmp.ne.s32.totalorder %s183, %s185
      %p192 = scmp.eq.s32.totalorder %s28, 1
      %p193 = por %p191, %p192
      %p194 = scmp.ne.s32.totalorder %s185, %s186
      %p195 = scmp.eq.s32.totalorder %s28, 0
      %p196 = por %p194, %p195
      %p197 = scmp.ne.s32.totalorder %s185, %s186
      %p198 = scmp.eq.s32.totalorder %s29, 1
      %p199 = por %p197, %p198
      %p201 = scmp.ne.s32.totalorder %s186, %s200
      %p202 = scmp.eq.s32.totalorder %s29, 0
      %p203 = por %p201, %p202
      %s205 = sadd.s32 %s204, 1
      %p208 = scmp.eq.s32.totalorder %s23, 1
      %p209 = scmp.ne.s32.totalorder %s204, %s206
      %p210 = scmp.eq.s32.totalorder %s23, 0
      %p211 = por %p209, %p210
      %p212 = scmp.ne.s32.totalorder %s204, %s206
      %p213 = scmp.eq.s32.totalorder %s28, 1
      %p214 = por %p212, %p213
      %p215 = scmp.ne.s32.totalorder %s206, %s207
      %p216 = scmp.eq.s32.totalorder %s28, 0
      %p217 = por %p215, %p216
      %p218 = scmp.ne.s32.totalorder %s206, %s207
      %p219 = scmp.eq.s32.totalorder %s29, 1
      %p220 = por %p218, %p219
      %p222 = scmp.ne.s32.totalorder %s207, %s221
      %p223 = scmp.eq.s32.totalorder %s29, 0
      %p224 = por %p222, %p223
      %s225 = ssub.s32 %s23, %s30
      %p226 = scmp.eq.s32.totalorder %s225, 0
      %s228 = sadd.s32 %s227, 1
      %s229 = scalar_select %p226, %s227, %s228
      %p232 = pneg %p226
      %p233 = scmp.eq.s32.totalorder %s23, 1
      %p234 = por %p232, %p233
      %p235 = scmp.ne.s32.totalorder %s227, %s230
      %p236 = scmp.eq.s32.totalorder %s23, 0
      %p237 = por %p235, %p236
      %p238 = scmp.ne.s32.totalorder %s227, %s230
      %p239 = scmp.eq.s32.totalorder %s28, 1
      %p240 = por %p238, %p239
      %p241 = scmp.ne.s32.totalorder %s230, %s231
      %p242 = scmp.eq.s32.totalorder %s28, 0
      %p243 = por %p241, %p242
      %p244 = scmp.ne.s32.totalorder %s230, %s231
      %p245 = scmp.eq.s32.totalorder %s29, 1
      %p246 = por %p244, %p245
      %p248 = scmp.ne.s32.totalorder %s231, %s247
      %p249 = scmp.eq.s32.totalorder %s29, 0
      %p250 = por %p248, %p249
      %p251 = scmp.le.s32.totalorder 1, %s23
      %p252 = scmp.lt.s32.totalorder %s23, 3
      %p253 = pnand %p251, %p252
      %p254 = pneg %p253
      // Predicated region
      $region9: #{tpu_custom_call.1} parent=5 // pred_check
        _
      $region10: #{tpu_custom_call.1} parent=5 // pred_check_branch
        %256 = sbr.rel (%p253) target = $region12
      $region11: #{tpu_custom_call.1} parent=5 // pred_region
        %s257 = ssub.s32 %s23, 1
        // Predicated region
        $region13: #{tpu_custom_call.1} parent=11 // pred_check
          %p258 = pneg %p70
        $region14: #{tpu_custom_call.1} parent=11 // pred_check_branch
          %260 = sbr.rel (%p258) target = $region16
        $region15: #{tpu_custom_call.1} parent=11 // pred_region
          %s262 = ssub.s32 256, 256
          %263 = vsyncadd [#allocation6], %s262
          %s264 = sshll.u32 [#allocation5], 4
          %s265 = int_to_ptr.vmem [resolvable:$true] %s264
          %270 = dma.hbm_to_vmem [thread:$0]  %s1, 256, %s265, [#allocation6], 128, 128, 8
        $region16: #{tpu_custom_call.1} parent=11 // pred_fallthru
          _
        // Predicated region
        $region17: #{tpu_custom_call.1} parent=11 // pred_check
          %p271 = pneg %p91
        $region18: #{tpu_custom_call.1} parent=11 // pred_check_branch
          %273 = sbr.rel (%p271) target = $region20
        $region19: #{tpu_custom_call.1} parent=11 // pred_region
          _
        $region20: #{tpu_custom_call.1} parent=11 // pred_fallthru
          _
        // Predicated region
        $region21: #{tpu_custom_call.1} parent=11 // pred_check
          %p274 = pneg %p112
        $region22: #{tpu_custom_call.1} parent=11 // pred_check_branch
          %276 = sbr.rel (%p274) target = $region24
        $region23: #{tpu_custom_call.1} parent=11 // pred_region
          %s278 = ssub.s32 2048, 2048
          %279 = vsyncadd [#allocation6], %s278
          %s280 = sshll.u32 [#allocation7], 4
          %s281 = int_to_ptr.vmem [resolvable:$true] %s280
          %286 = dma.hbm_to_vmem [thread:$0]  %s3, 2048, %s281, [#allocation6], 128, 128, 8
        $region24: #{tpu_custom_call.1} parent=11 // pred_fallthru
          _
        // Predicated region
        $region25: #{tpu_custom_call.1} parent=11 // pred_check
          %p287 = pneg %p133
        $region26: #{tpu_custom_call.1} parent=11 // pred_check_branch
          %289 = sbr.rel (%p287) target = $region28
        $region27: #{tpu_custom_call.1} parent=11 // pred_region
          _
        $region28: #{tpu_custom_call.1} parent=11 // pred_fallthru
          _
        // Predicated region
        $region29: #{tpu_custom_call.1} parent=11 // pred_check
          %p290 = pneg %p154
        $region30: #{tpu_custom_call.1} parent=11 // pred_check_branch
          %292 = sbr.rel (%p290) target = $region32
        $region31: #{tpu_custom_call.1} parent=11 // pred_region
          %s294 = ssub.s32 2048, 2048
          %295 = vsyncadd [#allocation9], %s294
          %s296 = sshll.u32 [#allocation8], 4
          %s297 = int_to_ptr.vmem [resolvable:$true] %s296
          %302 = dma.hbm_to_vmem [thread:$0]  %s5, 2048, %s297, [#allocation9], 128, 128, 8
        $region32: #{tpu_custom_call.1} parent=11 // pred_fallthru
          _
        // Predicated region
        $region33: #{tpu_custom_call.1} parent=11 // pred_check
          %p303 = pneg %p175
        $region34: #{tpu_custom_call.1} parent=11 // pred_check_branch
          %305 = sbr.rel (%p303) target = $region36
        $region35: #{tpu_custom_call.1} parent=11 // pred_region
          _
        $region36: #{tpu_custom_call.1} parent=11 // pred_fallthru
          _
        // Predicated region
        $region37: #{tpu_custom_call.1} parent=11 // pred_check
          %p306 = pneg %p196
        $region38: #{tpu_custom_call.1} parent=11 // pred_check_branch
          %308 = sbr.rel (%p306) target = $region40
        $region39: #{tpu_custom_call.1} parent=11 // pred_region
          %s310 = ssub.s32 2048, 2048
          %311 = vsyncadd [#allocation9], %s310
          %s312 = sshll.u32 [#allocation10], 4
          %s313 = int_to_ptr.vmem [resolvable:$true] %s312
          %318 = dma.hbm_to_vmem [thread:$0]  %s7, 2048, %s313, [#allocation9], 128, 128, 8
        $region40: #{tpu_custom_call.1} parent=11 // pred_fallthru
          _
        // Predicated region
        $region41: #{tpu_custom_call.1} parent=11 // pred_check
          %p319 = pneg %p217
        $region42: #{tpu_custom_call.1} parent=11 // pred_check_branch
          %321 = sbr.rel (%p319) target = $region44
        $region43: #{tpu_custom_call.1} parent=11 // pred_region
          _
        $region44: #{tpu_custom_call.1} parent=11 // pred_fallthru
          _
      $region12: #{tpu_custom_call.1} parent=5 // pred_fallthru
        _
      %p322 = scmp.lt.s32.totalorder %s23, 2
      // Predicated region
      $region45: #{tpu_custom_call.1} parent=5 // pred_check
        %p323 = pneg %p322
      $region46: #{tpu_custom_call.1} parent=5 // pred_check_branch
        %325 = sbr.rel (%p323) target = $region48
      $region47: #{tpu_custom_call.1} parent=5 // pred_region
        // Predicated region
        $region49: #{tpu_custom_call.1} parent=47 // pred_check
          %p326 = pneg %p43
        $region50: #{tpu_custom_call.1} parent=47 // pred_check_branch
          %328 = sbr.rel (%p326) target = $region52
        $region51: #{tpu_custom_call.1} parent=47 // pred_region
          %s329 = sand.u32 %s33, 1
          %s330 = scalar_lea.sflag [#allocation3], %s329
          %s331 = sand.u32 %s33, 1
          %s332 = smul.addr %s331, 8
          %s333 = scalar_lea.vmem [#allocation2], %s332
          %s335 = ssub.s32 128, 128
          %336 = vsyncadd %s330, %s335
          %s337 = smul.addr %s23, 128
          %s338 = scalar_lea.hbm %s0, %s337
          %s340 = sshll.u32 %s333, 4
          %s341 = int_to_ptr.vmem [resolvable:$true] %s340
          %343 = dma.hbm_to_vmem [thread:$0]  %s338, 128, %s341, %s330
        $region52: #{tpu_custom_call.1} parent=47 // pred_fallthru
          _
      $region48: #{tpu_custom_call.1} parent=5 // pred_fallthru
        _
      %p344 = scmp.le.s32.totalorder 1, %s23
      %p345 = scmp.lt.s32.totalorder %s23, 3
      %p346 = pnand %p344, %p345
      %p347 = pneg %p346
      // Predicated region
      $region53: #{tpu_custom_call.1} parent=5 // pred_check
        _
      $region54: #{tpu_custom_call.1} parent=5 // pred_check_branch
        %349 = sbr.rel (%p346) target = $region56
      $region55: #{tpu_custom_call.1} parent=5 // pred_region
        %s350 = ssub.s32 %s23, 1
        %s351 = sand.u32 %s36, 1
        %s352 = scalar_lea.sflag [#allocation3], %s351
        %s353 = sand.u32 %s36, 1
        %s354 = smul.addr %s353, 8
        %s355 = scalar_lea.vmem [#allocation2], %s354
        // Predicated region
        $region57: #{tpu_custom_call.1} parent=55 // pred_check
          %p356 = pneg %p49
        $region58: #{tpu_custom_call.1} parent=55 // pred_check_branch
          %358 = sbr.rel (%p356) target = $region60
        $region59: #{tpu_custom_call.1} parent=55 // pred_region
          %359 = dma.done %s352, 128
        $region60: #{tpu_custom_call.1} parent=55 // pred_fallthru
          _
        // Predicated region
        $region61: #{tpu_custom_call.1} parent=55 // pred_check
          %p360 = pneg %p70
        $region62: #{tpu_custom_call.1} parent=55 // pred_check_branch
          %362 = sbr.rel (%p360) target = $region64
        $region63: #{tpu_custom_call.1} parent=55 // pred_region
          %363 = dma.done [#allocation6], 256
        $region64: #{tpu_custom_call.1} parent=55 // pred_fallthru
          _
        // Predicated region
        $region65: #{tpu_custom_call.1} parent=55 // pred_check
          %p364 = pneg %p112
        $region66: #{tpu_custom_call.1} parent=55 // pred_check_branch
          %366 = sbr.rel (%p364) target = $region68
        $region67: #{tpu_custom_call.1} parent=55 // pred_region
          %367 = dma.done [#allocation6], 2048
        $region68: #{tpu_custom_call.1} parent=55 // pred_fallthru
          _
        // Predicated region
        $region69: #{tpu_custom_call.1} parent=55 // pred_check
          %p368 = pneg %p154
        $region70: #{tpu_custom_call.1} parent=55 // pred_check_branch
          %370 = sbr.rel (%p368) target = $region72
        $region71: #{tpu_custom_call.1} parent=55 // pred_region
          %371 = dma.done [#allocation9], 2048
        $region72: #{tpu_custom_call.1} parent=55 // pred_fallthru
          _
        // Predicated region
        $region73: #{tpu_custom_call.1} parent=55 // pred_check
          %p372 = pneg %p196
        $region74: #{tpu_custom_call.1} parent=55 // pred_check_branch
          %374 = sbr.rel (%p372) target = $region76
        $region75: #{tpu_custom_call.1} parent=55 // pred_region
          %375 = dma.done [#allocation9], 2048
        $region76: #{tpu_custom_call.1} parent=55 // pred_fallthru
          _
        %s376 = sand.u32 %s36, 1
        %s377 = scalar_lea.sflag [#allocation3], %s376
        %s378 = sand.u32 %s36, 1
        %s379 = smul.addr %s378, 8
        %s380 = scalar_lea.vmem [#allocation2], %s379
        %p381 = pneg %p49
        %p382 = pneg %p46
        %p383 = pneg %p70
        %p384 = pneg %p67
        %p385 = pneg %p91
        %p386 = pneg %p88
        %p387 = pneg %p112
        %p388 = pneg %p109
        %p389 = pneg %p133
        %p390 = pneg %p130
        %p391 = pneg %p154
        %p392 = pneg %p151
        %p393 = pneg %p175
        %p394 = pneg %p172
        %p395 = pneg %p196
        %p396 = pneg %p193
        %p397 = pneg %p217
        %p398 = pneg %p214
        %p399 = pneg %p243
        %p400 = pneg %p240
        %s401 = sand.u32 %s230, 1
        %s402 = scalar_lea.sflag [#allocation4], %s401
        %s403 = sand.u32 %s230, 1
        %s404 = smul.addr %s403, 8
        %s405 = scalar_lea.vmem [#allocation11], %s404
        %v406 = vld [vmem:[%s355] sm:$0xff]
        %v407 = vld [vmem:[#allocation5] sm:$0xff]
        %v408 = vld [vmem:[#allocation5 + $0x8] sm:$0xff]
        %v409 = vld [vmem:[%s2] sm:$0x1]
        %v411 = vlaneseq
        %v412 = vshrl.u32 %v411, 7
        %v413 = vsub.s32 0, %v412
        %v414 = vrot.slane %v409, %v413
        %vm416 = vcmask 130048
        %v418 = vsel %vm416, %v406, 0
        %420 = vmatprep.subr.mxu0 0.0
        %421 = vmatpush1.msra.mxu0 0.0
        %422 = vmatprep.subr.mxu0 0.0
        %423 = vmatpush1.msra.mxu0 0.0
        %424 = vmatprep.subr.mxu0 0.0
        %425 = vmatpush1.msra.mxu0 0.0
        %426 = vmatprep.subr.mxu0 0.0
        %427 = vmatpush1.msra.mxu0 0.0
        %428 = vmatprep.subr.mxu0 0.0
        %429 = vmatpush1.msra.mxu0 0.0
        %430 = vmatprep.subr.mxu0 0.0
        %431 = vmatpush1.msra.mxu0 0.0
        %432 = vmatprep.subr.mxu0 0.0
        %433 = vmatpush1.msra.mxu0 0.0
        %434 = vmatprep.subr.mxu0 0.0
        %435 = vmatpush1.msra.mxu0 0.0
        %436 = vmatprep.subr.mxu0 0.0
        %437 = vmatpush1.msra.mxu0 0.0
        %438 = vmatprep.subr.mxu0 0.0
        %439 = vmatpush1.msra.mxu0 0.0
        %440 = vmatprep.subr.mxu0 0.0
        %441 = vmatpush1.msra.mxu0 0.0
        %442 = vmatprep.subr.mxu0 0.0
        %443 = vmatpush1.msra.mxu0 0.0
        %444 = vmatprep.subr.mxu0 0.0
        %445 = vmatpush1.msra.mxu0 0.0
        %446 = vmatprep.subr.mxu0 0.0
        %447 = vmatpush1.msra.mxu0 0.0
        %448 = vmatprep.subr.mxu0 0.0
        %449 = vmatpush1.msra.mxu0 %v408
        %450 = vmatprep.subr.mxu0 0.0
        %451 = vmatpush1.msra.mxu0 %v407
        %452 = vmatprep.subr.mxu0 0.0
        %453 = vmatpush2.msra.mxu0 0.0
        %454 = vmatprep.subr.mxu0 0.0
        %455 = vmatpush2.msra.mxu0 0.0
        %456 = vmatprep.subr.mxu0 0.0
        %457 = vmatpush2.msra.mxu0 0.0
        %458 = vmatprep.subr.mxu0 0.0
        %459 = vmatpush2.msra.mxu0 0.0
        %460 = vmatprep.subr.mxu0 0.0
        %461 = vmatpush2.msra.mxu0 0.0
        %462 = vmatprep.subr.mxu0 0.0
        %463 = vmatpush2.msra.mxu0 0.0
        %464 = vmatprep.subr.mxu0 0.0
        %465 = vmatpush2.msra.mxu0 0.0
        %466 = vmatprep.subr.mxu0 0.0
        %467 = vmatpush2.msra.mxu0 0.0
        %468 = vmatprep.subr.mxu0 0.0
        %469 = vmatpush2.msra.mxu0 0.0
        %470 = vmatprep.subr.mxu0 0.0
        %471 = vmatpush2.msra.mxu0 0.0
        %472 = vmatprep.subr.mxu0 0.0
        %473 = vmatpush2.msra.mxu0 0.0
        %474 = vmatprep.subr.mxu0 0.0
        %475 = vmatpush2.msra.mxu0 0.0
        %476 = vmatprep.subr.mxu0 0.0
        %477 = vmatpush2.msra.mxu0 0.0
        %478 = vmatprep.subr.mxu0 0.0
        %479 = vmatpush2.msra.mxu0 0.0
        %480 = vmatprep.subr.mxu0 0.0
        %481 = vmatpush2.msra.mxu0 0.0
        %482 = vmatprep.subr.mxu0 0.0
        %483 = vmatpush2.msra.mxu0 0.0
        %484 = vmatprep.mubr.f32.mxu0 0.0
        %485 = vmatmul.mubr.f32.gmra.mxu0 %v418
        %v486 = vpop.f32.mrf.mxu0
        %v487 = vadd.f32 %v414, %v486
        %v488 = vpop.f32.mrf.mxu0
        %489 = vdwg.mxu0
        %v490 = vmax.f32 %v487, 0.0
        %v491 = vld [vmem:[#allocation7] sm:$0xff]
        %v492 = vld [vmem:[#allocation7 + $0x8] sm:$0xff]
        %v493 = vld [vmem:[#allocation7 + $0x10] sm:$0xff]
        %v494 = vld [vmem:[#allocation7 + $0x18] sm:$0xff]
        %v495 = vld [vmem:[#allocation7 + $0x20] sm:$0xff]
        %v496 = vld [vmem:[#allocation7 + $0x28] sm:$0xff]
        %v497 = vld [vmem:[#allocation7 + $0x30] sm:$0xff]
        %v498 = vld [vmem:[#allocation7 + $0x38] sm:$0xff]
        %v499 = vld [vmem:[#allocation7 + $0x40] sm:$0xff]
        %v500 = vld [vmem:[#allocation7 + $0x48] sm:$0xff]
        %v501 = vld [vmem:[#allocation7 + $0x50] sm:$0xff]
        %v502 = vld [vmem:[#allocation7 + $0x58] sm:$0xff]
        %v503 = vld [vmem:[#allocation7 + $0x60] sm:$0xff]
        %v504 = vld [vmem:[#allocation7 + $0x68] sm:$0xff]
        %v505 = vld [vmem:[#allocation7 + $0x70] sm:$0xff]
        %v506 = vld [vmem:[#allocation7 + $0x78] sm:$0xff]
        %v507 = vld [vmem:[%s4] sm:$0x1]
        %v509 = vlaneseq
        %v510 = vshrl.u32 %v509, 7
        %v511 = vsub.s32 0, %v510
        %v512 = vrot.slane %v507, %v511
        %514 = vmatprep.subr.mxu0 0.0
        %515 = vmatpush1.msra.mxu0 %v506
        %516 = vmatprep.subr.mxu0 0.0
        %517 = vmatpush1.msra.mxu0 %v505
        %518 = vmatprep.subr.mxu0 0.0
        %519 = vmatpush1.msra.mxu0 %v504
        %520 = vmatprep.subr.mxu0 0.0
        %521 = vmatpush1.msra.mxu0 %v503
        %522 = vmatprep.subr.mxu0 0.0
        %523 = vmatpush1.msra.mxu0 %v502
        %524 = vmatprep.subr.mxu0 0.0
        %525 = vmatpush1.msra.mxu0 %v501
        %526 = vmatprep.subr.mxu0 0.0
        %527 = vmatpush1.msra.mxu0 %v500
        %528 = vmatprep.subr.mxu0 0.0
        %529 = vmatpush1.msra.mxu0 %v499
        %530 = vmatprep.subr.mxu0 0.0
        %531 = vmatpush1.msra.mxu0 %v498
        %532 = vmatprep.subr.mxu0 0.0
        %533 = vmatpush1.msra.mxu0 %v497
        %534 = vmatprep.subr.mxu0 0.0
        %535 = vmatpush1.msra.mxu0 %v496
        %536 = vmatprep.subr.mxu0 0.0
        %537 = vmatpush1.msra.mxu0 %v495
        %538 = vmatprep.subr.mxu0 0.0
        %539 = vmatpush1.msra.mxu0 %v494
        %540 = vmatprep.subr.mxu0 0.0
        %541 = vmatpush1.msra.mxu0 %v493
        %542 = vmatprep.subr.mxu0 0.0
        %543 = vmatpush1.msra.mxu0 %v492
        %544 = vmatprep.subr.mxu0 0.0
        %545 = vmatpush1.msra.mxu0 %v491
        %546 = vmatprep.subr.mxu0 0.0
        %547 = vmatpush2.msra.mxu0 0.0
        %548 = vmatprep.subr.mxu0 0.0
        %549 = vmatpush2.msra.mxu0 0.0
        %550 = vmatprep.subr.mxu0 0.0
        %551 = vmatpush2.msra.mxu0 0.0
        %552 = vmatprep.subr.mxu0 0.0
        %553 = vmatpush2.msra.mxu0 0.0
        %554 = vmatprep.subr.mxu0 0.0
        %555 = vmatpush2.msra.mxu0 0.0
        %556 = vmatprep.subr.mxu0 0.0
        %557 = vmatpush2.msra.mxu0 0.0
        %558 = vmatprep.subr.mxu0 0.0
        %559 = vmatpush2.msra.mxu0 0.0
        %560 = vmatprep.subr.mxu0 0.0
        %561 = vmatpush2.msra.mxu0 0.0
        %562 = vmatprep.subr.mxu0 0.0
        %563 = vmatpush2.msra.mxu0 0.0
        %564 = vmatprep.subr.mxu0 0.0
        %565 = vmatpush2.msra.mxu0 0.0
        %566 = vmatprep.subr.mxu0 0.0
        %567 = vmatpush2.msra.mxu0 0.0
        %568 = vmatprep.subr.mxu0 0.0
        %569 = vmatpush2.msra.mxu0 0.0
        %570 = vmatprep.subr.mxu0 0.0
        %571 = vmatpush2.msra.mxu0 0.0
        %572 = vmatprep.subr.mxu0 0.0
        %573 = vmatpush2.msra.mxu0 0.0
        %574 = vmatprep.subr.mxu0 0.0
        %575 = vmatpush2.msra.mxu0 0.0
        %576 = vmatprep.subr.mxu0 0.0
        %577 = vmatpush2.msra.mxu0 0.0
        %578 = vmatprep.mubr.f32.mxu0 0.0
        %579 = vmatmul.mubr.f32.gmra.mxu0 %v490
        %v580 = vpop.f32.mrf.mxu0
        %v581 = vadd.f32 %v512, %v580
        %v582 = vpop.f32.mrf.mxu0
        %583 = vdwg.mxu0
        %v584 = vmax.f32 %v581, 0.0
        %v585 = vld [vmem:[#allocation8] sm:$0xff]
        %v586 = vld [vmem:[#allocation8 + $0x8] sm:$0xff]
        %v587 = vld [vmem:[#allocation8 + $0x10] sm:$0xff]
        %v588 = vld [vmem:[#allocation8 + $0x18] sm:$0xff]
        %v589 = vld [vmem:[#allocation8 + $0x20] sm:$0xff]
        %v590 = vld [vmem:[#allocation8 + $0x28] sm:$0xff]
        %v591 = vld [vmem:[#allocation8 + $0x30] sm:$0xff]
        %v592 = vld [vmem:[#allocation8 + $0x38] sm:$0xff]
        %v593 = vld [vmem:[#allocation8 + $0x40] sm:$0xff]
        %v594 = vld [vmem:[#allocation8 + $0x48] sm:$0xff]
        %v595 = vld [vmem:[#allocation8 + $0x50] sm:$0xff]
        %v596 = vld [vmem:[#allocation8 + $0x58] sm:$0xff]
        %v597 = vld [vmem:[#allocation8 + $0x60] sm:$0xff]
        %v598 = vld [vmem:[#allocation8 + $0x68] sm:$0xff]
        %v599 = vld [vmem:[#allocation8 + $0x70] sm:$0xff]
        %v600 = vld [vmem:[#allocation8 + $0x78] sm:$0xff]
        %v601 = vld [vmem:[%s6] sm:$0x1]
        %v603 = vlaneseq
        %v604 = vshrl.u32 %v603, 7
        %v605 = vsub.s32 0, %v604
        %v606 = vrot.slane %v601, %v605
        %608 = vmatprep.subr.mxu0 0.0
        %609 = vmatpush1.msra.mxu0 %v600
        %610 = vmatprep.subr.mxu0 0.0
        %611 = vmatpush1.msra.mxu0 %v599
        %612 = vmatprep.subr.mxu0 0.0
        %613 = vmatpush1.msra.mxu0 %v598
        %614 = vmatprep.subr.mxu0 0.0
        %615 = vmatpush1.msra.mxu0 %v597
        %616 = vmatprep.subr.mxu0 0.0
        %617 = vmatpush1.msra.mxu0 %v596
        %618 = vmatprep.subr.mxu0 0.0
        %619 = vmatpush1.msra.mxu0 %v595
        %620 = vmatprep.subr.mxu0 0.0
        %621 = vmatpush1.msra.mxu0 %v594
        %622 = vmatprep.subr.mxu0 0.0
        %623 = vmatpush1.msra.mxu0 %v593
        %624 = vmatprep.subr.mxu0 0.0
        %625 = vmatpush1.msra.mxu0 %v592
        %626 = vmatprep.subr.mxu0 0.0
        %627 = vmatpush1.msra.mxu0 %v591
        %628 = vmatprep.subr.mxu0 0.0
        %629 = vmatpush1.msra.mxu0 %v590
        %630 = vmatprep.subr.mxu0 0.0
        %631 = vmatpush1.msra.mxu0 %v589
        %632 = vmatprep.subr.mxu0 0.0
        %633 = vmatpush1.msra.mxu0 %v588
        %634 = vmatprep.subr.mxu0 0.0
        %635 = vmatpush1.msra.mxu0 %v587
        %636 = vmatprep.subr.mxu0 0.0
        %637 = vmatpush1.msra.mxu0 %v586
        %638 = vmatprep.subr.mxu0 0.0
        %639 = vmatpush1.msra.mxu0 %v585
        %640 = vmatprep.subr.mxu0 0.0
        %641 = vmatpush2.msra.mxu0 0.0
        %642 = vmatprep.subr.mxu0 0.0
        %643 = vmatpush2.msra.mxu0 0.0
        %644 = vmatprep.subr.mxu0 0.0
        %645 = vmatpush2.msra.mxu0 0.0
        %646 = vmatprep.subr.mxu0 0.0
        %647 = vmatpush2.msra.mxu0 0.0
        %648 = vmatprep.subr.mxu0 0.0
        %649 = vmatpush2.msra.mxu0 0.0
        %650 = vmatprep.subr.mxu0 0.0
        %651 = vmatpush2.msra.mxu0 0.0
        %652 = vmatprep.subr.mxu0 0.0
        %653 = vmatpush2.msra.mxu0 0.0
        %654 = vmatprep.subr.mxu0 0.0
        %655 = vmatpush2.msra.mxu0 0.0
        %656 = vmatprep.subr.mxu0 0.0
        %657 = vmatpush2.msra.mxu0 0.0
        %658 = vmatprep.subr.mxu0 0.0
        %659 = vmatpush2.msra.mxu0 0.0
        %660 = vmatprep.subr.mxu0 0.0
        %661 = vmatpush2.msra.mxu0 0.0
        %662 = vmatprep.subr.mxu0 0.0
        %663 = vmatpush2.msra.mxu0 0.0
        %664 = vmatprep.subr.mxu0 0.0
        %665 = vmatpush2.msra.mxu0 0.0
        %666 = vmatprep.subr.mxu0 0.0
        %667 = vmatpush2.msra.mxu0 0.0
        %668 = vmatprep.subr.mxu0 0.0
        %669 = vmatpush2.msra.mxu0 0.0
        %670 = vmatprep.subr.mxu0 0.0
        %671 = vmatpush2.msra.mxu0 0.0
        %672 = vmatprep.mubr.f32.mxu0 0.0
        %673 = vmatmul.mubr.f32.gmra.mxu0 %v584
        %v674 = vpop.f32.mrf.mxu0
        %v675 = vadd.f32 %v606, %v674
        %v676 = vpop.f32.mrf.mxu0
        %677 = vdwg.mxu0
        %v678 = vmax.f32 %v675, 0.0
        %v679 = vld [vmem:[#allocation10] sm:$0xff]
        %v680 = vld [vmem:[#allocation10 + $0x8] sm:$0xff]
        %v681 = vld [vmem:[#allocation10 + $0x10] sm:$0xff]
        %v682 = vld [vmem:[#allocation10 + $0x18] sm:$0xff]
        %v683 = vld [vmem:[#allocation10 + $0x20] sm:$0xff]
        %v684 = vld [vmem:[#allocation10 + $0x28] sm:$0xff]
        %v685 = vld [vmem:[#allocation10 + $0x30] sm:$0xff]
        %v686 = vld [vmem:[#allocation10 + $0x38] sm:$0xff]
        %v687 = vld [vmem:[#allocation10 + $0x40] sm:$0xff]
        %v688 = vld [vmem:[#allocation10 + $0x48] sm:$0xff]
        %v689 = vld [vmem:[#allocation10 + $0x50] sm:$0xff]
        %v690 = vld [vmem:[#allocation10 + $0x58] sm:$0xff]
        %v691 = vld [vmem:[#allocation10 + $0x60] sm:$0xff]
        %v692 = vld [vmem:[#allocation10 + $0x68] sm:$0xff]
        %v693 = vld [vmem:[#allocation10 + $0x70] sm:$0xff]
        %v694 = vld [vmem:[#allocation10 + $0x78] sm:$0xff]
        %v695 = vld [vmem:[%s8] sm:$0x1]
        %v697 = vlaneseq
        %v698 = vshrl.u32 %v697, 7
        %v699 = vsub.s32 0, %v698
        %v700 = vrot.slane %v695, %v699
        %702 = vmatprep.subr.mxu0 0.0
        %703 = vmatpush1.msra.mxu0 %v694
        %704 = vmatprep.subr.mxu0 0.0
        %705 = vmatpush1.msra.mxu0 %v693
        %706 = vmatprep.subr.mxu0 0.0
        %707 = vmatpush1.msra.mxu0 %v692
        %708 = vmatprep.subr.mxu0 0.0
        %709 = vmatpush1.msra.mxu0 %v691
        %710 = vmatprep.subr.mxu0 0.0
        %711 = vmatpush1.msra.mxu0 %v690
        %712 = vmatprep.subr.mxu0 0.0
        %713 = vmatpush1.msra.mxu0 %v689
        %714 = vmatprep.subr.mxu0 0.0
        %715 = vmatpush1.msra.mxu0 %v688
        %716 = vmatprep.subr.mxu0 0.0
        %717 = vmatpush1.msra.mxu0 %v687
        %718 = vmatprep.subr.mxu0 0.0
        %719 = vmatpush1.msra.mxu0 %v686
        %720 = vmatprep.subr.mxu0 0.0
        %721 = vmatpush1.msra.mxu0 %v685
        %722 = vmatprep.subr.mxu0 0.0
        %723 = vmatpush1.msra.mxu0 %v684
        %724 = vmatprep.subr.mxu0 0.0
        %725 = vmatpush1.msra.mxu0 %v683
        %726 = vmatprep.subr.mxu0 0.0
        %727 = vmatpush1.msra.mxu0 %v682
        %728 = vmatprep.subr.mxu0 0.0
        %729 = vmatpush1.msra.mxu0 %v681
        %730 = vmatprep.subr.mxu0 0.0
        %731 = vmatpush1.msra.mxu0 %v680
        %732 = vmatprep.subr.mxu0 0.0
        %733 = vmatpush1.msra.mxu0 %v679
        %734 = vmatprep.subr.mxu0 0.0
        %735 = vmatpush2.msra.mxu0 0.0
        %736 = vmatprep.subr.mxu0 0.0
        %737 = vmatpush2.msra.mxu0 0.0
        %738 = vmatprep.subr.mxu0 0.0
        %739 = vmatpush2.msra.mxu0 0.0
        %740 = vmatprep.subr.mxu0 0.0
        %741 = vmatpush2.msra.mxu0 0.0
        %742 = vmatprep.subr.mxu0 0.0
        %743 = vmatpush2.msra.mxu0 0.0
        %744 = vmatprep.subr.mxu0 0.0
        %745 = vmatpush2.msra.mxu0 0.0
        %746 = vmatprep.subr.mxu0 0.0
        %747 = vmatpush2.msra.mxu0 0.0
        %748 = vmatprep.subr.mxu0 0.0
        %749 = vmatpush2.msra.mxu0 0.0
        %750 = vmatprep.subr.mxu0 0.0
        %751 = vmatpush2.msra.mxu0 0.0
        %752 = vmatprep.subr.mxu0 0.0
        %753 = vmatpush2.msra.mxu0 0.0
        %754 = vmatprep.subr.mxu0 0.0
        %755 = vmatpush2.msra.mxu0 0.0
        %756 = vmatprep.subr.mxu0 0.0
        %757 = vmatpush2.msra.mxu0 0.0
        %758 = vmatprep.subr.mxu0 0.0
        %759 = vmatpush2.msra.mxu0 0.0
        %760 = vmatprep.subr.mxu0 0.0
        %761 = vmatpush2.msra.mxu0 0.0
        %762 = vmatprep.subr.mxu0 0.0
        %763 = vmatpush2.msra.mxu0 0.0
        %764 = vmatprep.subr.mxu0 0.0
        %765 = vmatpush2.msra.mxu0 0.0
        %766 = vmatprep.mubr.f32.mxu0 0.0
        %767 = vmatmul.mubr.f32.gmra.mxu0 %v678
        %v768 = vpop.f32.mrf.mxu0
        %v769 = vadd.f32 %v700, %v768
        %v770 = vpop.f32.mrf.mxu0
        %771 = vdwg.mxu0
        %772 = vst [vmem:[%s405] sm:$0xff] %v769
        %s773 = sand.u32 %s230, 1
        %s774 = scalar_lea.sflag [#allocation4], %s773
        %s775 = sand.u32 %s230, 1
        %s776 = smul.addr %s775, 8
        %s777 = scalar_lea.vmem [#allocation11], %s776
        // Predicated region
        $region77: #{tpu_custom_call.1} parent=55 // pred_check
          %p778 = pneg %p240
        $region78: #{tpu_custom_call.1} parent=55 // pred_check_branch
          %780 = sbr.rel (%p778) target = $region80
        $region79: #{tpu_custom_call.1} parent=55 // pred_region
          %s782 = ssub.s32 128, 128
          %783 = vsyncadd %s774, %s782
          %s784 = smul.addr %s28, 128
          %s785 = scalar_lea.hbm %s9, %s784
          %s787 = sshll.u32 %s777, 4
          %s788 = int_to_ptr.vmem [resolvable:$true] %s787
          %790 = dma.vmem_to_hbm [thread:$0]  %s788, 128, %s785, %s774
        $region80: #{tpu_custom_call.1} parent=55 // pred_fallthru
          _
      $region56: #{tpu_custom_call.1} parent=5 // pred_fallthru
        _
      %p791 = scmp.le.s32.totalorder 2, %s23
      // Predicated region
      $region81: #{tpu_custom_call.1} parent=5 // pred_check
        %p792 = pneg %p791
      $region82: #{tpu_custom_call.1} parent=5 // pred_check_branch
        %794 = sbr.rel (%p792) target = $region84
      $region83: #{tpu_custom_call.1} parent=5 // pred_region
        %s795 = ssub.s32 %s23, 2
        // Predicated region
        $region85: #{tpu_custom_call.1} parent=83 // pred_check
          %p796 = pneg %p246
        $region86: #{tpu_custom_call.1} parent=83 // pred_check_branch
          %798 = sbr.rel (%p796) target = $region88
        $region87: #{tpu_custom_call.1} parent=83 // pred_region
          %s799 = sand.u32 %s231, 1
          %s800 = scalar_lea.sflag [#allocation4], %s799
          %s801 = sand.u32 %s231, 1
          %s802 = smul.addr %s801, 8
          %s803 = scalar_lea.vmem [#allocation11], %s802
          %804 = dma.done %s800, 128
        $region88: #{tpu_custom_call.1} parent=83 // pred_fallthru
          _
      $region84: #{tpu_custom_call.1} parent=5 // pred_fallthru
        _
    $region6: #{tpu_custom_call.1} parent=1 // loop_footer
      %s27 = sadd.s32 1, %s23
    $region7: #{tpu_custom_call.1} parent=1 // loop_footer_branch
      %22 = sbr.rel target = $region3
    $region8: #{tpu_custom_call.1} parent=1 // loop_exit
      _
    %805 = vsyncpa [#allocation3], 1
    %s806 = scalar_lea.sflag [#allocation3], 1
    %807 = vsyncpa %s806, 1
    %808 = vsyncpa [#allocation6], 1
    %809 = vsyncpa [#allocation9], 1
    %810 = vsyncpa [#allocation4], 1
    %s811 = scalar_lea.sflag [#allocation4], 1
    %812 = vsyncpa %s811, 1

// kernel: tpu_custom_call.1
$region0: #{tpu_custom_call.1}
  #allocation0 [shape = 'u32[]', space=smem, size = 0x4, offset = 0x4, fixed_abs, tag = 'smem constant byte address 0x4 - core index']
  #allocation1 [shape = 'u32[144,128]{1,0:T(1,128)}', space=vmem, size = 0x12000, scoped, tag = 'internal scratch']
  %s0 = inlined_call_operand.hbm [shape: f32[16,16], index: 0, kind: input, shape index: {}]
  %s1 = inlined_call_operand.hbm [shape: f32[16,128], index: 1, kind: input, shape index: {}]
  %s2 = inlined_call_operand.vmem [shape: f32[1,128], index: 2, kind: input, shape index: {}]
  %s3 = inlined_call_operand.hbm [shape: f32[128,128], index: 3, kind: input, shape index: {}]
  %s4 = inlined_call_operand.vmem [shape: f32[1,128], index: 4, kind: input, shape index: {}]
  %s5 = inlined_call_operand.hbm [shape: f32[128,128], index: 5, kind: input, shape index: {}]
  %s6 = inlined_call_operand.vmem [shape: f32[1,128], index: 6, kind: input, shape index: {}]
  %s7 = inlined_call_operand.hbm [shape: f32[128,128], index: 7, kind: input, shape index: {}]
  %s8 = inlined_call_operand.vmem [shape: f32[1,128], index: 8, kind: input, shape index: {}]
  %s9 = inlined_call_operand.hbm [shape: f32[16,128], index: 9, kind: output, shape index: {}]
  %s10 = sld [smem:[#allocation0]]
  $region89: #{tpu_custom_call.1} parent=0
    _
  %s12 = ssub.s32 1, %s10
  %s13 = scalar_select 0, %s12, %s10
  $region1: #{tpu_custom_call.1} parent=0
    #allocation2 [shape = 'u8[8192]{0}', space=vmem, size = 0x2000, scoped, tag = 'input window, operand 0']
    #allocation3 [shape = 's32[2]{0}', space=sflag, size = 0x8, scoped, tag = 'scoped memory for tpu_custom_call.1']
    #allocation4 [shape = 's32[2]{0}', space=sflag, size = 0x8, scoped, tag = 'scoped memory for tpu_custom_call.1']
    #allocation5 [shape = 'u8[8192]{0}', space=vmem, size = 0x2000, scoped, tag = 'input window, operand 1, single buffered']
    #allocation6 [shape = 's32[1]{0}', space=sflag, size = 0x4, scoped, tag = 'scoped memory for tpu_custom_call.1']
    #allocation7 [shape = 'u8[65536]{0}', space=vmem, size = 0x10000, scoped, tag = 'input window, operand 3, single buffered']
    #allocation8 [shape = 'u8[65536]{0}', space=vmem, size = 0x10000, scoped, tag = 'input window, operand 5, single buffered']
    #allocation9 [shape = 's32[1]{0}', space=sflag, size = 0x4, scoped, tag = 'scoped memory for tpu_custom_call.1']
    #allocation10 [shape = 'u8[65536]{0}', space=vmem, size = 0x10000, scoped, tag = 'input window, operand 7, single buffered']
    #allocation11 [shape = 'u8[8192]{0}', space=vmem, size = 0x2000, scoped, tag = 'output window, operand 0']
    %14 = vsyncpa [#allocation3], 0
    %s15 = scalar_lea.sflag [#allocation3], 1
    %16 = vsyncpa %s15, 0
    %17 = vsyncpa [#allocation6], 0
    %18 = vsyncpa [#allocation9], 0
    %19 = vsyncpa [#allocation4], 0
    %s20 = scalar_lea.sflag [#allocation4], 1
    %21 = vsyncpa %s20, 0
    loop: start=0, step=1, limit=4
    $region2: #{tpu_custom_call.1} parent=1 // loop_pre_header
      _
    $region3: #{tpu_custom_call.1} parent=1 // loop_header
      %s23 = sphi 0, %s27
      %p24 = scmp.ge.s32.totalorder %s23, 4
      %s33 = sphi 0, %s35
      %s36 = sphi 0, %s33
      %s37 = sphi 0, %s36
      %s53 = sphi 0, %s37
      %s57 = sphi 0, %s57
      %s59 = sphi 0, %s57
      %s60 = sphi 0, %s59
      %s74 = sphi 0, %s60
      %s78 = sphi 0, %s78
      %s80 = sphi 0, %s78
      %s81 = sphi 0, %s80
      %s95 = sphi 0, %s81
      %s99 = sphi 0, %s99
      %s101 = sphi 0, %s99
      %s102 = sphi 0, %s101
      %s116 = sphi 0, %s102
      %s120 = sphi 0, %s120
      %s122 = sphi 0, %s120
      %s123 = sphi 0, %s122
      %s137 = sphi 0, %s123
      %s141 = sphi 0, %s141
      %s143 = sphi 0, %s141
      %s144 = sphi 0, %s143
      %s158 = sphi 0, %s144
      %s162 = sphi 0, %s162
      %s164 = sphi 0, %s162
      %s165 = sphi 0, %s164
      %s179 = sphi 0, %s165
      %s183 = sphi 0, %s183
      %s185 = sphi 0, %s183
      %s186 = sphi 0, %s185
      %s200 = sphi 0, %s186
      %s204 = sphi 0, %s204
      %s206 = sphi 0, %s204
      %s207 = sphi 0, %s206
      %s221 = sphi 0, %s207
      %s227 = sphi 0, %s229
      %s230 = sphi 0, %s227
      %s231 = sphi 0, %s230
      %s247 = sphi 0, %s231
    $region4: #{tpu_custom_call.1} parent=1 // loop_header_branch
      %26 = sbr.rel (%p24) target = $region8
    $region5: #{tpu_custom_call.1} parent=1 // loop_body
      %s28 = ssub.s32 %s23, 1
      %s29 = ssub.s32 %s23, 2
      %s30 = sadd.s32 %s23, 1
      %s31 = ssub.s32 %s23, %s30
      %p32 = scmp.eq.s32.totalorder %s31, 0
      %s34 = sadd.s32 %s33, 1
      %s35 = scalar_select %p32, %s33, %s34
      %p38 = pneg %p32
      %p39 = scmp.eq.s32.totalorder %s23, 1
      %p40 = por %p38, %p39
      %p41 = scmp.ne.s32.totalorder %s33, %s36
      %p42 = scmp.eq.s32.totalorder %s23, 0
      %p43 = por %p41, %p42
      %p44 = scmp.ne.s32.totalorder %s33, %s36
      %p45 = scmp.eq.s32.totalorder %s28, 1
      %p46 = por %p44, %p45
      %p47 = scmp.ne.s32.totalorder %s36, %s37
      %p48 = scmp.eq.s32.totalorder %s28, 0
      %p49 = por %p47, %p48
      %p50 = scmp.ne.s32.totalorder %s36, %s37
      %p51 = scmp.eq.s32.totalorder %s29, 1
      %p52 = por %p50, %p51
      %p54 = scmp.ne.s32.totalorder %s37, %s53
      %p55 = scmp.eq.s32.totalorder %s29, 0
      %p56 = por %p54, %p55
      %s58 = sadd.s32 %s57, 1
      %p61 = scmp.eq.s32.totalorder %s23, 1
      %p62 = scmp.ne.s32.totalorder %s57, %s59
      %p63 = scmp.eq.s32.totalorder %s23, 0
      %p64 = por %p62, %p63
      %p65 = scmp.ne.s32.totalorder %s57, %s59
      %p66 = scmp.eq.s32.totalorder %s28, 1
      %p67 = por %p65, %p66
      %p68 = scmp.ne.s32.totalorder %s59, %s60
      %p69 = scmp.eq.s32.totalorder %s28, 0
      %p70 = por %p68, %p69
      %p71 = scmp.ne.s32.totalorder %s59, %s60
      %p72 = scmp.eq.s32.totalorder %s29, 1
      %p73 = por %p71, %p72
      %p75 = scmp.ne.s32.totalorder %s60, %s74
      %p76 = scmp.eq.s32.totalorder %s29, 0
      %p77 = por %p75, %p76
      %s79 = sadd.s32 %s78, 1
      %p82 = scmp.eq.s32.totalorder %s23, 1
      %p83 = scmp.ne.s32.totalorder %s78, %s80
      %p84 = scmp.eq.s32.totalorder %s23, 0
      %p85 = por %p83, %p84
      %p86 = scmp.ne.s32.totalorder %s78, %s80
      %p87 = scmp.eq.s32.totalorder %s28, 1
      %p88 = por %p86, %p87
      %p89 = scmp.ne.s32.totalorder %s80, %s81
      %p90 = scmp.eq.s32.totalorder %s28, 0
      %p91 = por %p89, %p90
      %p92 = scmp.ne.s32.totalorder %s80, %s81
      %p93 = scmp.eq.s32.totalorder %s29, 1
      %p94 = por %p92, %p93
      %p96 = scmp.ne.s32.totalorder %s81, %s95
      %p97 = scmp.eq.s32.totalorder %s29, 0
      %p98 = por %p96, %p97
      %s100 = sadd.s32 %s99, 1
      %p103 = scmp.eq.s32.totalorder %s23, 1
      %p104 = scmp.ne.s32.totalorder %s99, %s101
      %p105 = scmp.eq.s32.totalorder %s23, 0
      %p106 = por %p104, %p105
      %p107 = scmp.ne.s32.totalorder %s99, %s101
      %p108 = scmp.eq.s32.totalorder %s28, 1
      %p109 = por %p107, %p108
      %p110 = scmp.ne.s32.totalorder %s101, %s102
      %p111 = scmp.eq.s32.totalorder %s28, 0
      %p112 = por %p110, %p111
      %p113 = scmp.ne.s32.totalorder %s101, %s102
      %p114 = scmp.eq.s32.totalorder %s29, 1
      %p115 = por %p113, %p114
      %p117 = scmp.ne.s32.totalorder %s102, %s116
      %p118 = scmp.eq.s32.totalorder %s29, 0
      %p119 = por %p117, %p118
      %s121 = sadd.s32 %s120, 1
      %p124 = scmp.eq.s32.totalorder %s23, 1
      %p125 = scmp.ne.s32.totalorder %s120, %s122
      %p126 = scmp.eq.s32.totalorder %s23, 0
      %p127 = por %p125, %p126
      %p128 = scmp.ne.s32.totalorder %s120, %s122
      %p129 = scmp.eq.s32.totalorder %s28, 1
      %p130 = por %p128, %p129
      %p131 = scmp.ne.s32.totalorder %s122, %s123
      %p132 = scmp.eq.s32.totalorder %s28, 0
      %p133 = por %p131, %p132
      %p134 = scmp.ne.s32.totalorder %s122, %s123
      %p135 = scmp.eq.s32.totalorder %s29, 1
      %p136 = por %p134, %p135
      %p138 = scmp.ne.s32.totalorder %s123, %s137
      %p139 = scmp.eq.s32.totalorder %s29, 0
      %p140 = por %p138, %p139
      %s142 = sadd.s32 %s141, 1
      %p145 = scmp.eq.s32.totalorder %s23, 1
      %p146 = scmp.ne.s32.totalorder %s141, %s143
      %p147 = scmp.eq.s32.totalorder %s23, 0
      %p148 = por %p146, %p147
      %p149 = scmp.ne.s32.totalorder %s141, %s143
      %p150 = scmp.eq.s32.totalorder %s28, 1
      %p151 = por %p149, %p150
      %p152 = scmp.ne.s32.totalorder %s143, %s144
      %p153 = scmp.eq.s32.totalorder %s28, 0
      %p154 = por %p152, %p153
      %p155 = scmp.ne.s32.totalorder %s143, %s144
      %p156 = scmp.eq.s32.totalorder %s29, 1
      %p157 = por %p155, %p156
      %p159 = scmp.ne.s32.totalorder %s144, %s158
      %p160 = scmp.eq.s32.totalorder %s29, 0
      %p161 = por %p159, %p160
      %s163 = sadd.s32 %s162, 1
      %p166 = scmp.eq.s32.totalorder %s23, 1
      %p167 = scmp.ne.s32.totalorder %s162, %s164
      %p168 = scmp.eq.s32.totalorder %s23, 0
      %p169 = por %p167, %p168
      %p170 = scmp.ne.s32.totalorder %s162, %s164
      %p171 = scmp.eq.s32.totalorder %s28, 1
      %p172 = por %p170, %p171
      %p173 = scmp.ne.s32.totalorder %s164, %s165
      %p174 = scmp.eq.s32.totalorder %s28, 0
      %p175 = por %p173, %p174
      %p176 = scmp.ne.s32.totalorder %s164, %s165
      %p177 = scmp.eq.s32.totalorder %s29, 1
      %p178 = por %p176, %p177
      %p180 = scmp.ne.s32.totalorder %s165, %s179
      %p181 = scmp.eq.s32.totalorder %s29, 0
      %p182 = por %p180, %p181
      %s184 = sadd.s32 %s183, 1
      %p187 = scmp.eq.s32.totalorder %s23, 1
      %p188 = scmp.ne.s32.totalorder %s183, %s185
      %p189 = scmp.eq.s32.totalorder %s23, 0
      %p190 = por %p188, %p189
      %p191 = scmp.ne.s32.totalorder %s183, %s185
      %p192 = scmp.eq.s32.totalorder %s28, 1
      %p193 = por %p191, %p192
      %p194 = scmp.ne.s32.totalorder %s185, %s186
      %p195 = scmp.eq.s32.totalorder %s28, 0
      %p196 = por %p194, %p195
      %p197 = scmp.ne.s32.totalorder %s185, %s186
      %p198 = scmp.eq.s32.totalorder %s29, 1
      %p199 = por %p197, %p198
      %p201 = scmp.ne.s32.totalorder %s186, %s200
      %p202 = scmp.eq.s32.totalorder %s29, 0
      %p203 = por %p201, %p202
      %s205 = sadd.s32 %s204, 1
      %p208 = scmp.eq.s32.totalorder %s23, 1
      %p209 = scmp.ne.s32.totalorder %s204, %s206
      %p210 = scmp.eq.s32.totalorder %s23, 0
      %p211 = por %p209, %p210
      %p212 = scmp.ne.s32.totalorder %s204, %s206
      %p213 = scmp.eq.s32.totalorder %s28, 1
      %p214 = por %p212, %p213
      %p215 = scmp.ne.s32.totalorder %s206, %s207
      %p216 = scmp.eq.s32.totalorder %s28, 0
      %p217 = por %p215, %p216
      %p218 = scmp.ne.s32.totalorder %s206, %s207
      %p219 = scmp.eq.s32.totalorder %s29, 1
      %p220 = por %p218, %p219
      %p222 = scmp.ne.s32.totalorder %s207, %s221
      %p223 = scmp.eq.s32.totalorder %s29, 0
      %p224 = por %p222, %p223
      %s225 = ssub.s32 %s23, %s30
      %p226 = scmp.eq.s32.totalorder %s225, 0
      %s228 = sadd.s32 %s227, 1
      %s229 = scalar_select %p226, %s227, %s228
      %p232 = pneg %p226
      %p233 = scmp.eq.s32.totalorder %s23, 1
      %p234 = por %p232, %p233
      %p235 = scmp.ne.s32.totalorder %s227, %s230
      %p236 = scmp.eq.s32.totalorder %s23, 0
      %p237 = por %p235, %p236
      %p238 = scmp.ne.s32.totalorder %s227, %s230
      %p239 = scmp.eq.s32.totalorder %s28, 1
      %p240 = por %p238, %p239
      %p241 = scmp.ne.s32.totalorder %s230, %s231
      %p242 = scmp.eq.s32.totalorder %s28, 0
      %p243 = por %p241, %p242
      %p244 = scmp.ne.s32.totalorder %s230, %s231
      %p245 = scmp.eq.s32.totalorder %s29, 1
      %p246 = por %p244, %p245
      %p248 = scmp.ne.s32.totalorder %s231, %s247
      %p249 = scmp.eq.s32.totalorder %s29, 0
      %p250 = por %p248, %p249
      %p251 = scmp.le.s32.totalorder 1, %s23
      %p252 = scmp.lt.s32.totalorder %s23, 3
      %p253 = pnand %p251, %p252
      %p254 = pneg %p253
      // Predicated region
      $region9: #{tpu_custom_call.1} parent=5 // pred_check
        _
      $region10: #{tpu_custom_call.1} parent=5 // pred_check_branch
        %256 = sbr.rel (%p253) target = $region12
      $region11: #{tpu_custom_call.1} parent=5 // pred_region
        %s257 = ssub.s32 %s23, 1
        // Predicated region
        $region13: #{tpu_custom_call.1} parent=11 // pred_check
          %p258 = pneg %p70
        $region14: #{tpu_custom_call.1} parent=11 // pred_check_branch
          %260 = sbr.rel (%p258) target = $region16
        $region15: #{tpu_custom_call.1} parent=11 // pred_region
          %s262 = ssub.s32 256, 256
          %263 = vsyncadd [#allocation6], %s262
          %s264 = sshll.u32 [#allocation5], 4
          %s265 = int_to_ptr.vmem [resolvable:$true] %s264
          %270 = dma.hbm_to_vmem [thread:$0]  %s1, 256, %s265, [#allocation6], 128, 128, 8
        $region16: #{tpu_custom_call.1} parent=11 // pred_fallthru
          _
        // Predicated region
        $region17: #{tpu_custom_call.1} parent=11 // pred_check
          %p271 = pneg %p91
        $region18: #{tpu_custom_call.1} parent=11 // pred_check_branch
          %273 = sbr.rel (%p271) target = $region20
        $region19: #{tpu_custom_call.1} parent=11 // pred_region
          _
        $region20: #{tpu_custom_call.1} parent=11 // pred_fallthru
          _
        // Predicated region
        $region21: #{tpu_custom_call.1} parent=11 // pred_check
          %p274 = pneg %p112
        $region22: #{tpu_custom_call.1} parent=11 // pred_check_branch
          %276 = sbr.rel (%p274) target = $region24
        $region23: #{tpu_custom_call.1} parent=11 // pred_region
          %s278 = ssub.s32 2048, 2048
          %279 = vsyncadd [#allocation6], %s278
          %s280 = sshll.u32 [#allocation7], 4
          %s281 = int_to_ptr.vmem [resolvable:$true] %s280
          %286 = dma.hbm_to_vmem [thread:$0]  %s3, 2048, %s281, [#allocation6], 128, 128, 8
        $region24: #{tpu_custom_call.1} parent=11 // pred_fallthru
          _
        // Predicated region
        $region25: #{tpu_custom_call.1} parent=11 // pred_check
          %p287 = pneg %p133
        $region26: #{tpu_custom_call.1} parent=11 // pred_check_branch
          %289 = sbr.rel (%p287) target = $region28
        $region27: #{tpu_custom_call.1} parent=11 // pred_region
          _
        $region28: #{tpu_custom_call.1} parent=11 // pred_fallthru
          _
        // Predicated region
        $region29: #{tpu_custom_call.1} parent=11 // pred_check
          %p290 = pneg %p154
        $region30: #{tpu_custom_call.1} parent=11 // pred_check_branch
          %292 = sbr.rel (%p290) target = $region32
        $region31: #{tpu_custom_call.1} parent=11 // pred_region
          %s294 = ssub.s32 2048, 2048
          %295 = vsyncadd [#allocation9], %s294
          %s296 = sshll.u32 [#allocation8], 4
          %s297 = int_to_ptr.vmem [resolvable:$true] %s296
          %302 = dma.hbm_to_vmem [thread:$0]  %s5, 2048, %s297, [#allocation9], 128, 128, 8
        $region32: #{tpu_custom_call.1} parent=11 // pred_fallthru
          _
        // Predicated region
        $region33: #{tpu_custom_call.1} parent=11 // pred_check
          %p303 = pneg %p175
        $region34: #{tpu_custom_call.1} parent=11 // pred_check_branch
          %305 = sbr.rel (%p303) target = $region36
        $region35: #{tpu_custom_call.1} parent=11 // pred_region
          _
        $region36: #{tpu_custom_call.1} parent=11 // pred_fallthru
          _
        // Predicated region
        $region37: #{tpu_custom_call.1} parent=11 // pred_check
          %p306 = pneg %p196
        $region38: #{tpu_custom_call.1} parent=11 // pred_check_branch
          %308 = sbr.rel (%p306) target = $region40
        $region39: #{tpu_custom_call.1} parent=11 // pred_region
          %s310 = ssub.s32 2048, 2048
          %311 = vsyncadd [#allocation9], %s310
          %s312 = sshll.u32 [#allocation10], 4
          %s313 = int_to_ptr.vmem [resolvable:$true] %s312
          %318 = dma.hbm_to_vmem [thread:$0]  %s7, 2048, %s313, [#allocation9], 128, 128, 8
        $region40: #{tpu_custom_call.1} parent=11 // pred_fallthru
          _
        // Predicated region
        $region41: #{tpu_custom_call.1} parent=11 // pred_check
          %p319 = pneg %p217
        $region42: #{tpu_custom_call.1} parent=11 // pred_check_branch
          %321 = sbr.rel (%p319) target = $region44
        $region43: #{tpu_custom_call.1} parent=11 // pred_region
          _
        $region44: #{tpu_custom_call.1} parent=11 // pred_fallthru
          _
      $region12: #{tpu_custom_call.1} parent=5 // pred_fallthru
        _
      %p322 = scmp.lt.s32.totalorder %s23, 2
      // Predicated region
      $region45: #{tpu_custom_call.1} parent=5 // pred_check
        %p323 = pneg %p322
      $region46: #{tpu_custom_call.1} parent=5 // pred_check_branch
        %325 = sbr.rel (%p323) target = $region48
      $region47: #{tpu_custom_call.1} parent=5 // pred_region
        // Predicated region
        $region49: #{tpu_custom_call.1} parent=47 // pred_check
          %p326 = pneg %p43
        $region50: #{tpu_custom_call.1} parent=47 // pred_check_branch
          %328 = sbr.rel (%p326) target = $region52
        $region51: #{tpu_custom_call.1} parent=47 // pred_region
          %s329 = sand.u32 %s33, 1
          %s330 = scalar_lea.sflag [#allocation3], %s329
          %s331 = sand.u32 %s33, 1
          %s332 = smul.addr %s331, 8
          %s333 = scalar_lea.vmem [#allocation2], %s332
          %s335 = ssub.s32 128, 128
          %336 = vsyncadd %s330, %s335
          %s337 = smul.addr %s23, 128
          %s338 = scalar_lea.hbm %s0, %s337
          %s340 = sshll.u32 %s333, 4
          %s341 = int_to_ptr.vmem [resolvable:$true] %s340
          %343 = dma.hbm_to_vmem [thread:$0]  %s338, 128, %s341, %s330
        $region52: #{tpu_custom_call.1} parent=47 // pred_fallthru
          _
      $region48: #{tpu_custom_call.1} parent=5 // pred_fallthru
        _
      %p344 = scmp.le.s32.totalorder 1, %s23
      %p345 = scmp.lt.s32.totalorder %s23, 3
      %p346 = pnand %p344, %p345
      %p347 = pneg %p346
      // Predicated region
      $region53: #{tpu_custom_call.1} parent=5 // pred_check
        _
      $region54: #{tpu_custom_call.1} parent=5 // pred_check_branch
        %349 = sbr.rel (%p346) target = $region56
      $region55: #{tpu_custom_call.1} parent=5 // pred_region
        %s350 = ssub.s32 %s23, 1
        %s351 = sand.u32 %s36, 1
        %s352 = scalar_lea.sflag [#allocation3], %s351
        %s353 = sand.u32 %s36, 1
        %s354 = smul.addr %s353, 8
        %s355 = scalar_lea.vmem [#allocation2], %s354
        // Predicated region
        $region57: #{tpu_custom_call.1} parent=55 // pred_check
          %p356 = pneg %p49
        $region58: #{tpu_custom_call.1} parent=55 // pred_check_branch
          %358 = sbr.rel (%p356) target = $region60
        $region59: #{tpu_custom_call.1} parent=55 // pred_region
          %359 = dma.done %s352, 128
        $region60: #{tpu_custom_call.1} parent=55 // pred_fallthru
          _
        // Predicated region
        $region61: #{tpu_custom_call.1} parent=55 // pred_check
          %p360 = pneg %p70
        $region62: #{tpu_custom_call.1} parent=55 // pred_check_branch
          %362 = sbr.rel (%p360) target = $region64
        $region63: #{tpu_custom_call.1} parent=55 // pred_region
          %363 = dma.done [#allocation6], 256
        $region64: #{tpu_custom_call.1} parent=55 // pred_fallthru
          _
        // Predicated region
        $region65: #{tpu_custom_call.1} parent=55 // pred_check
          %p364 = pneg %p112
        $region66: #{tpu_custom_call.1} parent=55 // pred_check_branch
          %366 = sbr.rel (%p364) target = $region68
        $region67: #{tpu_custom_call.1} parent=55 // pred_region
          %367 = dma.done [#allocation6], 2048
        $region68: #{tpu_custom_call.1} parent=55 // pred_fallthru
          _
        // Predicated region
        $region69: #{tpu_custom_call.1} parent=55 // pred_check
          %p368 = pneg %p154
        $region70: #{tpu_custom_call.1} parent=55 // pred_check_branch
          %370 = sbr.rel (%p368) target = $region72
        $region71: #{tpu_custom_call.1} parent=55 // pred_region
          %371 = dma.done [#allocation9], 2048
        $region72: #{tpu_custom_call.1} parent=55 // pred_fallthru
          _
        // Predicated region
        $region73: #{tpu_custom_call.1} parent=55 // pred_check
          %p372 = pneg %p196
        $region74: #{tpu_custom_call.1} parent=55 // pred_check_branch
          %374 = sbr.rel (%p372) target = $region76
        $region75: #{tpu_custom_call.1} parent=55 // pred_region
          %375 = dma.done [#allocation9], 2048
        $region76: #{tpu_custom_call.1} parent=55 // pred_fallthru
          _
        %s376 = sand.u32 %s36, 1
        %s377 = scalar_lea.sflag [#allocation3], %s376
        %s378 = sand.u32 %s36, 1
        %s379 = smul.addr %s378, 8
        %s380 = scalar_lea.vmem [#allocation2], %s379
        %p381 = pneg %p49
        %p382 = pneg %p46
        %p383 = pneg %p70
        %p384 = pneg %p67
        %p385 = pneg %p91
        %p386 = pneg %p88
        %p387 = pneg %p112
        %p388 = pneg %p109
        %p389 = pneg %p133
        %p390 = pneg %p130
        %p391 = pneg %p154
        %p392 = pneg %p151
        %p393 = pneg %p175
        %p394 = pneg %p172
        %p395 = pneg %p196
        %p396 = pneg %p193
        %p397 = pneg %p217
        %p398 = pneg %p214
        %p399 = pneg %p243
        %p400 = pneg %p240
        %s401 = sand.u32 %s230, 1
        %s402 = scalar_lea.sflag [#allocation4], %s401
        %s403 = sand.u32 %s230, 1
        %s404 = smul.addr %s403, 8
        %s405 = scalar_lea.vmem [#allocation11], %s404
        %v406 = vld [vmem:[%s355] sm:$0xff]
        %v407 = vld [vmem:[#allocation5] sm:$0xff]
        %v408 = vld [vmem:[#allocation5 + $0x8] sm:$0xff]
        %v409 = vld [vmem:[%s2] sm:$0x1]
        %v411 = vlaneseq
        %v412 = vshrl.u32 %v411, 7
        %v413 = vsub.s32 0, %v412
        %v414 = vrot.slane %v409, %v413
        %vm416 = vcmask 130048
        %v418 = vsel %vm416, %v406, 0
        %420 = vmatprep.subr.mxu0 0.0
        %421 = vmatpush1.msra.mxu0 0.0
        %422 = vmatprep.subr.mxu0 0.0
        %423 = vmatpush1.msra.mxu0 0.0
        %424 = vmatprep.subr.mxu0 0.0
        %425 = vmatpush1.msra.mxu0 0.0
        %426 = vmatprep.subr.mxu0 0.0
        %427 = vmatpush1.msra.mxu0 0.0
        %428 = vmatprep.subr.mxu0 0.0
        %429 = vmatpush1.msra.mxu0 0.0
        %430 = vmatprep.subr.mxu0 0.0
        %431 = vmatpush1.msra.mxu0 0.0
        %432 = vmatprep.subr.mxu0 0.0
        %433 = vmatpush1.msra.mxu0 0.0
        %434 = vmatprep.subr.mxu0 0.0
        %435 = vmatpush1.msra.mxu0 0.0
        %436 = vmatprep.subr.mxu0 0.0
        %437 = vmatpush1.msra.mxu0 0.0
        %438 = vmatprep.subr.mxu0 0.0
        %439 = vmatpush1.msra.mxu0 0.0
        %440 = vmatprep.subr.mxu0 0.0
        %441 = vmatpush1.msra.mxu0 0.0
        %442 = vmatprep.subr.mxu0 0.0
        %443 = vmatpush1.msra.mxu0 0.0
        %444 = vmatprep.subr.mxu0 0.0
        %445 = vmatpush1.msra.mxu0 0.0
        %446 = vmatprep.subr.mxu0 0.0
        %447 = vmatpush1.msra.mxu0 0.0
        %448 = vmatprep.subr.mxu0 0.0
        %449 = vmatpush1.msra.mxu0 %v408
        %450 = vmatprep.subr.mxu0 0.0
        %451 = vmatpush1.msra.mxu0 %v407
        %452 = vmatprep.subr.mxu0 0.0
        %453 = vmatpush2.msra.mxu0 0.0
        %454 = vmatprep.subr.mxu0 0.0
        %455 = vmatpush2.msra.mxu0 0.0
        %456 = vmatprep.subr.mxu0 0.0
        %457 = vmatpush2.msra.mxu0 0.0
        %458 = vmatprep.subr.mxu0 0.0
        %459 = vmatpush2.msra.mxu0 0.0
        %460 = vmatprep.subr.mxu0 0.0
        %461 = vmatpush2.msra.mxu0 0.0
        %462 = vmatprep.subr.mxu0 0.0
        %463 = vmatpush2.msra.mxu0 0.0
        %464 = vmatprep.subr.mxu0 0.0
        %465 = vmatpush2.msra.mxu0 0.0
        %466 = vmatprep.subr.mxu0 0.0
        %467 = vmatpush2.msra.mxu0 0.0
        %468 = vmatprep.subr.mxu0 0.0
        %469 = vmatpush2.msra.mxu0 0.0
        %470 = vmatprep.subr.mxu0 0.0
        %471 = vmatpush2.msra.mxu0 0.0
        %472 = vmatprep.subr.mxu0 0.0
        %473 = vmatpush2.msra.mxu0 0.0
        %474 = vmatprep.subr.mxu0 0.0
        %475 = vmatpush2.msra.mxu0 0.0
        %476 = vmatprep.subr.mxu0 0.0
        %477 = vmatpush2.msra.mxu0 0.0
        %478 = vmatprep.subr.mxu0 0.0
        %479 = vmatpush2.msra.mxu0 0.0
        %480 = vmatprep.subr.mxu0 0.0
        %481 = vmatpush2.msra.mxu0 0.0
        %482 = vmatprep.subr.mxu0 0.0
        %483 = vmatpush2.msra.mxu0 0.0
        %484 = vmatprep.mubr.f32.mxu0 0.0
        %485 = vmatmul.mubr.f32.gmra.mxu0 %v418
        %v486 = vpop.f32.mrf.mxu0
        %v487 = vadd.f32 %v414, %v486
        %v488 = vpop.f32.mrf.mxu0
        %489 = vdwg.mxu0
        %v490 = vmax.f32 %v487, 0.0
        %v491 = vld [vmem:[#allocation7] sm:$0xff]
        %v492 = vld [vmem:[#allocation7 + $0x8] sm:$0xff]
        %v493 = vld [vmem:[#allocation7 + $0x10] sm:$0xff]
        %v494 = vld [vmem:[#allocation7 + $0x18] sm:$0xff]
        %v495 = vld [vmem:[#allocation7 + $0x20] sm:$0xff]
        %v496 = vld [vmem:[#allocation7 + $0x28] sm:$0xff]
        %v497 = vld [vmem:[#allocation7 + $0x30] sm:$0xff]
        %v498 = vld [vmem:[#allocation7 + $0x38] sm:$0xff]
        %v499 = vld [vmem:[#allocation7 + $0x40] sm:$0xff]
        %v500 = vld [vmem:[#allocation7 + $0x48] sm:$0xff]
        %v501 = vld [vmem:[#allocation7 + $0x50] sm:$0xff]
        %v502 = vld [vmem:[#allocation7 + $0x58] sm:$0xff]
        %v503 = vld [vmem:[#allocation7 + $0x60] sm:$0xff]
        %v504 = vld [vmem:[#allocation7 + $0x68] sm:$0xff]
        %v505 = vld [vmem:[#allocation7 + $0x70] sm:$0xff]
        %v506 = vld [vmem:[#allocation7 + $0x78] sm:$0xff]
        %v507 = vld [vmem:[%s4] sm:$0x1]
        %v509 = vlaneseq
        %v510 = vshrl.u32 %v509, 7
        %v511 = vsub.s32 0, %v510
        %v512 = vrot.slane %v507, %v511
        %514 = vmatprep.subr.mxu0 0.0
        %515 = vmatpush1.msra.mxu0 %v506
        %516 = vmatprep.subr.mxu0 0.0
        %517 = vmatpush1.msra.mxu0 %v505
        %518 = vmatprep.subr.mxu0 0.0
        %519 = vmatpush1.msra.mxu0 %v504
        %520 = vmatprep.subr.mxu0 0.0
        %521 = vmatpush1.msra.mxu0 %v503
        %522 = vmatprep.subr.mxu0 0.0
        %523 = vmatpush1.msra.mxu0 %v502
        %524 = vmatprep.subr.mxu0 0.0
        %525 = vmatpush1.msra.mxu0 %v501
        %526 = vmatprep.subr.mxu0 0.0
        %527 = vmatpush1.msra.mxu0 %v500
        %528 = vmatprep.subr.mxu0 0.0
        %529 = vmatpush1.msra.mxu0 %v499
        %530 = vmatprep.subr.mxu0 0.0
        %531 = vmatpush1.msra.mxu0 %v498
        %532 = vmatprep.subr.mxu0 0.0
        %533 = vmatpush1.msra.mxu0 %v497
        %534 = vmatprep.subr.mxu0 0.0
        %535 = vmatpush1.msra.mxu0 %v496
        %536 = vmatprep.subr.mxu0 0.0
        %537 = vmatpush1.msra.mxu0 %v495
        %538 = vmatprep.subr.mxu0 0.0
        %539 = vmatpush1.msra.mxu0 %v494
        %540 = vmatprep.subr.mxu0 0.0
        %541 = vmatpush1.msra.mxu0 %v493
        %542 = vmatprep.subr.mxu0 0.0
        %543 = vmatpush1.msra.mxu0 %v492
        %544 = vmatprep.subr.mxu0 0.0
        %545 = vmatpush1.msra.mxu0 %v491
        %546 = vmatprep.subr.mxu0 0.0
        %547 = vmatpush2.msra.mxu0 0.0
        %548 = vmatprep.subr.mxu0 0.0
        %549 = vmatpush2.msra.mxu0 0.0
        %550 = vmatprep.subr.mxu0 0.0
        %551 = vmatpush2.msra.mxu0 0.0
        %552 = vmatprep.subr.mxu0 0.0
        %553 = vmatpush2.msra.mxu0 0.0
        %554 = vmatprep.subr.mxu0 0.0
        %555 = vmatpush2.msra.mxu0 0.0
        %556 = vmatprep.subr.mxu0 0.0
        %557 = vmatpush2.msra.mxu0 0.0
        %558 = vmatprep.subr.mxu0 0.0
        %559 = vmatpush2.msra.mxu0 0.0
        %560 = vmatprep.subr.mxu0 0.0
        %561 = vmatpush2.msra.mxu0 0.0
        %562 = vmatprep.subr.mxu0 0.0
        %563 = vmatpush2.msra.mxu0 0.0
        %564 = vmatprep.subr.mxu0 0.0
        %565 = vmatpush2.msra.mxu0 0.0
        %566 = vmatprep.subr.mxu0 0.0
        %567 = vmatpush2.msra.mxu0 0.0
        %568 = vmatprep.subr.mxu0 0.0
        %569 = vmatpush2.msra.mxu0 0.0
        %570 = vmatprep.subr.mxu0 0.0
        %571 = vmatpush2.msra.mxu0 0.0
        %572 = vmatprep.subr.mxu0 0.0
        %573 = vmatpush2.msra.mxu0 0.0
        %574 = vmatprep.subr.mxu0 0.0
        %575 = vmatpush2.msra.mxu0 0.0
        %576 = vmatprep.subr.mxu0 0.0
        %577 = vmatpush2.msra.mxu0 0.0
        %578 = vmatprep.mubr.f32.mxu0 0.0
        %579 = vmatmul.mubr.f32.gmra.mxu0 %v490
        %v580 = vpop.f32.mrf.mxu0
        %v581 = vadd.f32 %v512, %v580
        %v582 = vpop.f32.mrf.mxu0
        %583 = vdwg.mxu0
        %v584 = vmax.f32 %v581, 0.0
        %v585 = vld [vmem:[#allocation8] sm:$0xff]
        %v586 = vld [vmem:[#allocation8 + $0x8] sm:$0xff]
        %v587 = vld [vmem:[#allocation8 + $0x10] sm:$0xff]
        %v588 = vld [vmem:[#allocation8 + $0x18] sm:$0xff]
        %v589 = vld [vmem:[#allocation8 + $0x20] sm:$0xff]
        %v590 = vld [vmem:[#allocation8 + $0x28] sm:$0xff]
        %v591 = vld [vmem:[#allocation8 + $0x30] sm:$0xff]
        %v592 = vld [vmem:[#allocation8 + $0x38] sm:$0xff]
        %v593 = vld [vmem:[#allocation8 + $0x40] sm:$0xff]
        %v594 = vld [vmem:[#allocation8 + $0x48] sm:$0xff]
        %v595 = vld [vmem:[#allocation8 + $0x50] sm:$0xff]
        %v596 = vld [vmem:[#allocation8 + $0x58] sm:$0xff]
        %v597 = vld [vmem:[#allocation8 + $0x60] sm:$0xff]
        %v598 = vld [vmem:[#allocation8 + $0x68] sm:$0xff]
        %v599 = vld [vmem:[#allocation8 + $0x70] sm:$0xff]
        %v600 = vld [vmem:[#allocation8 + $0x78] sm:$0xff]
        %v601 = vld [vmem:[%s6] sm:$0x1]
        %v603 = vlaneseq
        %v604 = vshrl.u32 %v603, 7
        %v605 = vsub.s32 0, %v604
        %v606 = vrot.slane %v601, %v605
        %608 = vmatprep.subr.mxu0 0.0
        %609 = vmatpush1.msra.mxu0 %v600
        %610 = vmatprep.subr.mxu0 0.0
        %611 = vmatpush1.msra.mxu0 %v599
        %612 = vmatprep.subr.mxu0 0.0
        %613 = vmatpush1.msra.mxu0 %v598
        %614 = vmatprep.subr.mxu0 0.0
        %615 = vmatpush1.msra.mxu0 %v597
        %616 = vmatprep.subr.mxu0 0.0
        %617 = vmatpush1.msra.mxu0 %v596
        %618 = vmatprep.subr.mxu0 0.0
        %619 = vmatpush1.msra.mxu0 %v595
        %620 = vmatprep.subr.mxu0 0.0
        %621 = vmatpush1.msra.mxu0 %v594
        %622 = vmatprep.subr.mxu0 0.0
        %623 = vmatpush1.msra.mxu0 %v593
        %624 = vmatprep.subr.mxu0 0.0
        %625 = vmatpush1.msra.mxu0 %v592
        %626 = vmatprep.subr.mxu0 0.0
        %627 = vmatpush1.msra.mxu0 %v591
        %628 = vmatprep.subr.mxu0 0.0
        %629 = vmatpush1.msra.mxu0 %v590
        %630 = vmatprep.subr.mxu0 0.0
        %631 = vmatpush1.msra.mxu0 %v589
        %632 = vmatprep.subr.mxu0 0.0
        %633 = vmatpush1.msra.mxu0 %v588
        %634 = vmatprep.subr.mxu0 0.0
        %635 = vmatpush1.msra.mxu0 %v587
        %636 = vmatprep.subr.mxu0 0.0
        %637 = vmatpush1.msra.mxu0 %v586
        %638 = vmatprep.subr.mxu0 0.0
        %639 = vmatpush1.msra.mxu0 %v585
        %640 = vmatprep.subr.mxu0 0.0
        %641 = vmatpush2.msra.mxu0 0.0
        %642 = vmatprep.subr.mxu0 0.0
        %643 = vmatpush2.msra.mxu0 0.0
        %644 = vmatprep.subr.mxu0 0.0
        %645 = vmatpush2.msra.mxu0 0.0
        %646 = vmatprep.subr.mxu0 0.0
        %647 = vmatpush2.msra.mxu0 0.0
        %648 = vmatprep.subr.mxu0 0.0
        %649 = vmatpush2.msra.mxu0 0.0
        %650 = vmatprep.subr.mxu0 0.0
        %651 = vmatpush2.msra.mxu0 0.0
        %652 = vmatprep.subr.mxu0 0.0
        %653 = vmatpush2.msra.mxu0 0.0
        %654 = vmatprep.subr.mxu0 0.0
        %655 = vmatpush2.msra.mxu0 0.0
        %656 = vmatprep.subr.mxu0 0.0
        %657 = vmatpush2.msra.mxu0 0.0
        %658 = vmatprep.subr.mxu0 0.0
        %659 = vmatpush2.msra.mxu0 0.0
        %660 = vmatprep.subr.mxu0 0.0
        %661 = vmatpush2.msra.mxu0 0.0
        %662 = vmatprep.subr.mxu0 0.0
        %663 = vmatpush2.msra.mxu0 0.0
        %664 = vmatprep.subr.mxu0 0.0
        %665 = vmatpush2.msra.mxu0 0.0
        %666 = vmatprep.subr.mxu0 0.0
        %667 = vmatpush2.msra.mxu0 0.0
        %668 = vmatprep.subr.mxu0 0.0
        %669 = vmatpush2.msra.mxu0 0.0
        %670 = vmatprep.subr.mxu0 0.0
        %671 = vmatpush2.msra.mxu0 0.0
        %672 = vmatprep.mubr.f32.mxu0 0.0
        %673 = vmatmul.mubr.f32.gmra.mxu0 %v584
        %v674 = vpop.f32.mrf.mxu0
        %v675 = vadd.f32 %v606, %v674
        %v676 = vpop.f32.mrf.mxu0
        %677 = vdwg.mxu0
        %v678 = vmax.f32 %v675, 0.0
        %v679 = vld [vmem:[#allocation10] sm:$0xff]
        %v680 = vld [vmem:[#allocation10 + $0x8] sm:$0xff]
        %v681 = vld [vmem:[#allocation10 + $0x10] sm:$0xff]
        %v682 = vld [vmem:[#allocation10 + $0x18] sm:$0xff]
        %v683 = vld [vmem:[#allocation10 + $0x20] sm:$0xff]
        %v684 = vld [vmem:[#allocation10 + $0x28] sm:$0xff]
        %v685 = vld [vmem:[#allocation10 + $0x30] sm:$0xff]
        %v686 = vld [vmem:[#allocation10 + $0x38] sm:$0xff]
        %v687 = vld [vmem:[#allocation10 + $0x40] sm:$0xff]
        %v688 = vld [vmem:[#allocation10 + $0x48] sm:$0xff]
        %v689 = vld [vmem:[#allocation10 + $0x50] sm:$0xff]
        %v690 = vld [vmem:[#allocation10 + $0x58] sm:$0xff]
        %v691 = vld [vmem:[#allocation10 + $0x60] sm:$0xff]
        %v692 = vld [vmem:[#allocation10 + $0x68] sm:$0xff]
        %v693 = vld [vmem:[#allocation10 + $0x70] sm:$0xff]
        %v694 = vld [vmem:[#allocation10 + $0x78] sm:$0xff]
        %v695 = vld [vmem:[%s8] sm:$0x1]
        %v697 = vlaneseq
        %v698 = vshrl.u32 %v697, 7
        %v699 = vsub.s32 0, %v698
        %v700 = vrot.slane %v695, %v699
        %702 = vmatprep.subr.mxu0 0.0
        %703 = vmatpush1.msra.mxu0 %v694
        %704 = vmatprep.subr.mxu0 0.0
        %705 = vmatpush1.msra.mxu0 %v693
        %706 = vmatprep.subr.mxu0 0.0
        %707 = vmatpush1.msra.mxu0 %v692
        %708 = vmatprep.subr.mxu0 0.0
        %709 = vmatpush1.msra.mxu0 %v691
        %710 = vmatprep.subr.mxu0 0.0
        %711 = vmatpush1.msra.mxu0 %v690
        %712 = vmatprep.subr.mxu0 0.0
        %713 = vmatpush1.msra.mxu0 %v689
        %714 = vmatprep.subr.mxu0 0.0
        %715 = vmatpush1.msra.mxu0 %v688
        %716 = vmatprep.subr.mxu0 0.0
        %717 = vmatpush1.msra.mxu0 %v687
        %718 = vmatprep.subr.mxu0 0.0
        %719 = vmatpush1.msra.mxu0 %v686
        %720 = vmatprep.subr.mxu0 0.0
        %721 = vmatpush1.msra.mxu0 %v685
        %722 = vmatprep.subr.mxu0 0.0
        %723 = vmatpush1.msra.mxu0 %v684
        %724 = vmatprep.subr.mxu0 0.0
        %725 = vmatpush1.msra.mxu0 %v683
        %726 = vmatprep.subr.mxu0 0.0
        %727 = vmatpush1.msra.mxu0 %v682
        %728 = vmatprep.subr.mxu0 0.0
        %729 = vmatpush1.msra.mxu0 %v681
        %730 = vmatprep.subr.mxu0 0.0
        %731 = vmatpush1.msra.mxu0 %v680
        %732 = vmatprep.subr.mxu0 0.0
        %733 = vmatpush1.msra.mxu0 %v679
        %734 = vmatprep.subr.mxu0 0.0
        %735 = vmatpush2.msra.mxu0 0.0
        %736 = vmatprep.subr.mxu0 0.0
        %737 = vmatpush2.msra.mxu0 0.0
        %738 = vmatprep.subr.mxu0 0.0
        %739 = vmatpush2.msra.mxu0 0.0
        %740 = vmatprep.subr.mxu0 0.0
        %741 = vmatpush2.msra.mxu0 0.0
        %742 = vmatprep.subr.mxu0 0.0
        %743 = vmatpush2.msra.mxu0 0.0
        %744 = vmatprep.subr.mxu0 0.0
        %745 = vmatpush2.msra.mxu0 0.0
        %746 = vmatprep.subr.mxu0 0.0
        %747 = vmatpush2.msra.mxu0 0.0
        %748 = vmatprep.subr.mxu0 0.0
        %749 = vmatpush2.msra.mxu0 0.0
        %750 = vmatprep.subr.mxu0 0.0
        %751 = vmatpush2.msra.mxu0 0.0
        %752 = vmatprep.subr.mxu0 0.0
        %753 = vmatpush2.msra.mxu0 0.0
        %754 = vmatprep.subr.mxu0 0.0
        %755 = vmatpush2.msra.mxu0 0.0
        %756 = vmatprep.subr.mxu0 0.0
        %757 = vmatpush2.msra.mxu0 0.0
        %758 = vmatprep.subr.mxu0 0.0
        %759 = vmatpush2.msra.mxu0 0.0
        %760 = vmatprep.subr.mxu0 0.0
        %761 = vmatpush2.msra.mxu0 0.0
        %762 = vmatprep.subr.mxu0 0.0
        %763 = vmatpush2.msra.mxu0 0.0
        %764 = vmatprep.subr.mxu0 0.0
        %765 = vmatpush2.msra.mxu0 0.0
        %766 = vmatprep.mubr.f32.mxu0 0.0
        %767 = vmatmul.mubr.f32.gmra.mxu0 %v678
        %v768 = vpop.f32.mrf.mxu0
        %v769 = vadd.f32 %v700, %v768
        %v770 = vpop.f32.mrf.mxu0
        %771 = vdwg.mxu0
        %772 = vst [vmem:[%s405] sm:$0xff] %v769
        %s773 = sand.u32 %s230, 1
        %s774 = scalar_lea.sflag [#allocation4], %s773
        %s775 = sand.u32 %s230, 1
        %s776 = smul.addr %s775, 8
        %s777 = scalar_lea.vmem [#allocation11], %s776
        // Predicated region
        $region77: #{tpu_custom_call.1} parent=55 // pred_check
          %p778 = pneg %p240
        $region78: #{tpu_custom_call.1} parent=55 // pred_check_branch
          %780 = sbr.rel (%p778) target = $region80
        $region79: #{tpu_custom_call.1} parent=55 // pred_region
          %s782 = ssub.s32 128, 128
          %783 = vsyncadd %s774, %s782
          %s784 = smul.addr %s28, 128
          %s785 = scalar_lea.hbm %s9, %s784
          %s787 = sshll.u32 %s777, 4
          %s788 = int_to_ptr.vmem [resolvable:$true] %s787
          %790 = dma.vmem_to_hbm [thread:$0]  %s788, 128, %s785, %s774
        $region80: #{tpu_custom_call.1} parent=55 // pred_fallthru
          _
      $region56: #{tpu_custom_call.1} parent=5 // pred_fallthru
        _
      %p791 = scmp.le.s32.totalorder 2, %s23
      // Predicated region
      $region81: #{tpu_custom_call.1} parent=5 // pred_check
        %p792 = pneg %p791
      $region82: #{tpu_custom_call.1} parent=5 // pred_check_branch
        %794 = sbr.rel (%p792) target = $region84
      $region83: #{tpu_custom_call.1} parent=5 // pred_region
        %s795 = ssub.s32 %s23, 2
        // Predicated region
        $region85: #{tpu_custom_call.1} parent=83 // pred_check
          %p796 = pneg %p246
        $region86: #{tpu_custom_call.1} parent=83 // pred_check_branch
          %798 = sbr.rel (%p796) target = $region88
        $region87: #{tpu_custom_call.1} parent=83 // pred_region
          %s799 = sand.u32 %s231, 1
          %s800 = scalar_lea.sflag [#allocation4], %s799
          %s801 = sand.u32 %s231, 1
          %s802 = smul.addr %s801, 8
          %s803 = scalar_lea.vmem [#allocation11], %s802
          %804 = dma.done %s800, 128
        $region88: #{tpu_custom_call.1} parent=83 // pred_fallthru
          _
      $region84: #{tpu_custom_call.1} parent=5 // pred_fallthru
        _
    $region6: #{tpu_custom_call.1} parent=1 // loop_footer
      %s27 = sadd.s32 1, %s23
    $region7: #{tpu_custom_call.1} parent=1 // loop_footer_branch
      %22 = sbr.rel target = $region3
    $region8: #{tpu_custom_call.1} parent=1 // loop_exit
      _
    %805 = vsyncpa [#allocation3], 1
    %s806 = scalar_lea.sflag [#allocation3], 1
    %807 = vsyncpa %s806, 1
    %808 = vsyncpa [#allocation6], 1
    %809 = vsyncpa [#allocation9], 1
    %810 = vsyncpa [#allocation4], 1
    %s811 = scalar_lea.sflag [#allocation4], 1
    %812 = vsyncpa %s811, 1

</llo_original>
